<compile_context>
chip_gen: v5e
topology: v5e:2x2
jax: 0.10.0
libtpu: 0.0.40
codegen_flags: <defaults>
</compile_context>

<pallas_src>
import functools
import math

import jax
import jax.numpy as jnp
from jax import lax
from jax.experimental import pallas as pl
from jax.experimental.pallas import tpu as pltpu

# 48 MiB: above the default scoped limits (16 MiB v5e / 32 MiB v6e,v7x) and below
# the smallest physical VMEM (64 MiB on v7x).
_VMEM_LIMIT = 48 * 1024 * 1024


def _row_tile(M):
    """Largest row tile <= 512 that divides M (multiples of 16 keep bf16 sublane packing clean)."""
    for t in (512, 256, 128, 64, 32, 16, 8):
        if M % t == 0:
            return t
    return M


# ----------------------------- Pallas kernels -------------------------------

def _dense_kernel(x_ref, w_ref, b_ref, o_ref, *, activation):
    y = jnp.dot(x_ref[...], w_ref[...], preferred_element_type=jnp.float32)
    y = y + b_ref[...]
    if activation == "gelu":
        # TODO(synk): HF BERT default is exact erf-GELU; tanh approximation used here.
        y = 0.5 * y * (1.0 + jnp.tanh(0.7978845608028654 * (y + 0.044715 * y * y * y)))
    o_ref[...] = y.astype(o_ref.dtype)


def dense(x, w, b, activation="none"):
    """y = act(x @ w + b).  x: [M, Din] bf16, w: [Din, Dout] bf16, b: [Dout] f32."""
    M, Din = x.shape
    Dout = w.shape[1]
    tm = _row_tile(M)
    cost = pl.CostEstimate(
        flops=2 * M * Din * Dout,
        transcendentals=M * Dout if activation == "gelu" else 0,
        bytes_accessed=(x.size * x.dtype.itemsize + w.size * w.dtype.itemsize
                        + Dout * 4 + M * Dout * x.dtype.itemsize),
    )
    return pl.pallas_call(
        functools.partial(_dense_kernel, activation=activation),
        out_shape=jax.ShapeDtypeStruct((M, Dout), x.dtype),
        grid=(M // tm,),
        in_specs=[
            pl.BlockSpec((tm, Din), lambda i: (i, 0)),
            # weight is grid-invariant and stays resident in VMEM
            pl.BlockSpec((Din, Dout), lambda i: (0, 0)),
            pl.BlockSpec((1, Dout), lambda i: (0, 0)),
        ],
        out_specs=pl.BlockSpec((tm, Dout), lambda i: (i, 0)),
        compiler_params=pltpu.CompilerParams(
            dimension_semantics=("parallel",), vmem_limit_bytes=_VMEM_LIMIT),
        cost_estimate=cost,
    )(x, w, b.reshape(1, Dout).astype(jnp.float32))


def _dense_add_ln_kernel(x_ref, w_ref, b_ref, r_ref, g_ref, bb_ref, o_ref, *, eps):
    # matmul epilogue: residual add + LayerNorm fused (saves a full HBM round trip)
    y = jnp.dot(x_ref[...], w_ref[...], preferred_element_type=jnp.float32)
    y = y + b_ref[...] + r_ref[...].astype(jnp.float32)
    mu = jnp.mean(y, axis=-1, keepdims=True)
    var = jnp.mean(jnp.square(y - mu), axis=-1, keepdims=True)
    o_ref[...] = ((y - mu) * lax.rsqrt(var + eps) * g_ref[...] + bb_ref[...]).astype(o_ref.dtype)


def dense_add_layernorm(x, w, b, res, gamma, beta, eps=1e-12):
    """LayerNorm(x @ w + b + res).  x: [M, Din], w: [Din, H], res: [M, H]."""
    M, Din = x.shape
    H = w.shape[1]
    tm = _row_tile(M)
    cost = pl.CostEstimate(
        flops=2 * M * Din * H + 10 * M * H,
        transcendentals=M,
        bytes_accessed=(x.size * x.dtype.itemsize + w.size * w.dtype.itemsize
                        + res.size * res.dtype.itemsize + M * H * x.dtype.itemsize),
    )
    return pl.pallas_call(
        functools.partial(_dense_add_ln_kernel, eps=eps),
        out_shape=jax.ShapeDtypeStruct((M, H), x.dtype),
        grid=(M // tm,),
        in_specs=[
            pl.BlockSpec((tm, Din), lambda i: (i, 0)),
            pl.BlockSpec((Din, H), lambda i: (0, 0)),
            pl.BlockSpec((1, H), lambda i: (0, 0)),
            pl.BlockSpec((tm, H), lambda i: (i, 0)),
            pl.BlockSpec((1, H), lambda i: (0, 0)),
            pl.BlockSpec((1, H), lambda i: (0, 0)),
        ],
        out_specs=pl.BlockSpec((tm, H), lambda i: (i, 0)),
        compiler_params=pltpu.CompilerParams(
            dimension_semantics=("parallel",), vmem_limit_bytes=_VMEM_LIMIT),
        cost_estimate=cost,
    )(x, w, b.reshape(1, H).astype(jnp.float32), res,
      gamma.reshape(1, H).astype(jnp.float32), beta.reshape(1, H).astype(jnp.float32))


def _ln_kernel(x_ref, g_ref, b_ref, o_ref, *, eps):
    x = x_ref[...].astype(jnp.float32)
    mu = jnp.mean(x, axis=-1, keepdims=True)
    var = jnp.mean(jnp.square(x - mu), axis=-1, keepdims=True)
    o_ref[...] = ((x - mu) * lax.rsqrt(var + eps) * g_ref[...] + b_ref[...]).astype(o_ref.dtype)


def layernorm(x, gamma, beta, out_dtype, eps=1e-12):
    """LayerNorm(x) over the last axis (no residual, no zeros DMA)."""
    M, H = x.shape
    tm = _row_tile(M)
    return pl.pallas_call(
        functools.partial(_ln_kernel, eps=eps),
        out_shape=jax.ShapeDtypeStruct((M, H), out_dtype),
        grid=(M // tm,),
        in_specs=[
            pl.BlockSpec((tm, H), lambda i: (i, 0)),
            pl.BlockSpec((1, H), lambda i: (0, 0)),
            pl.BlockSpec((1, H), lambda i: (0, 0)),
        ],
        out_specs=pl.BlockSpec((tm, H), lambda i: (i, 0)),
        compiler_params=pltpu.CompilerParams(
            dimension_semantics=("parallel",), vmem_limit_bytes=_VMEM_LIMIT),
    )(x, gamma.reshape(1, H).astype(jnp.float32), beta.reshape(1, H).astype(jnp.float32))


def _attn_kernel(qkv_ref, m_ref, o_ref, *, scale, nH, dh, H):
    # One batch element per grid step; all heads sliced in-kernel from the fused
    # QKV slab, so no split_heads / merge transposes go through HBM.
    # TODO(synk): for long sequences (S >= 384) tile the query dim (online-softmax)
    # instead of materializing full SxS scores per head.
    qkv = qkv_ref[0]                                   # [S, 3H] bf16
    mask = m_ref[0, 0]                                 # [S] f32 (1 = attend, 0 = pad)
    bias = ((1.0 - mask) * (-10000.0))[None, :]        # [1, S]
    outs = []
    for h in range(nH):                                # static unroll over heads
        q = qkv[:, h * dh:(h + 1) * dh]
        k = qkv[:, H + h * dh:H + (h + 1) * dh]
        v = qkv[:, 2 * H + h * dh:2 * H + (h + 1) * dh]
        # contract the head dims directly — no k.T materialization before the MXU
        s = lax.dot_general(q, k, (((1,), (1,)), ((), ())),
                            preferred_element_type=jnp.float32) * scale
        s = s + bias
        m = jnp.max(s, axis=-1, keepdims=True)
        p = jnp.exp(s - m)
        p = p * pl.reciprocal(jnp.sum(p, axis=-1, keepdims=True), approx=True)
        outs.append(jnp.dot(p.astype(v.dtype), v, preferred_element_type=jnp.float32))
    o_ref[0] = jnp.concatenate(outs, axis=-1).astype(o_ref.dtype)


def attention(qkv, attn_mask, *, nH, scale):
    """qkv: [B, S, 3H] (Q|K|V concatenated on the feature axis); attn_mask: [B, 1, S]."""
    B, S, threeH = qkv.shape
    H = threeH // 3
    dh = H // nH
    return pl.pallas_call(
        functools.partial(_attn_kernel, scale=scale, nH=nH, dh=dh, H=H),
        out_shape=jax.ShapeDtypeStruct((B, S, H), qkv.dtype),
        grid=(B,),
        in_specs=[
            pl.BlockSpec((1, S, threeH), lambda b: (b, 0, 0)),
            pl.BlockSpec((1, 1, S), lambda b: (b, 0, 0)),
        ],
        out_specs=pl.BlockSpec((1, S, H), lambda b: (b, 0, 0)),
        compiler_params=pltpu.CompilerParams(
            dimension_semantics=("parallel",), vmem_limit_bytes=_VMEM_LIMIT),
    )(qkv, attn_mask)


# ------------------------- parameter initialization -------------------------

def init_params(key, *, vocab, type_vocab, max_pos, H, I, L, num_labels):
    def nrm(k, shape, dtype=jnp.bfloat16):
        return (0.02 * jax.random.normal(k, shape, dtype=jnp.float32)).astype(dtype)

    keys = iter(jax.random.split(key, 8 + 4 * L))
    params = {
        "word_emb": nrm(next(keys), (vocab, H), jnp.float32),
        "pos_emb": nrm(next(keys), (max_pos, H), jnp.float32),
        "type_emb": nrm(next(keys), (type_vocab, H), jnp.float32),
        "emb_ln_g": jnp.ones((H,), jnp.float32),
        "emb_ln_b": jnp.zeros((H,), jnp.float32),
        "qa_w": nrm(next(keys), (H, num_labels), jnp.float32),  # qa_outputs: Linear(H, 2)
        "qa_b": jnp.zeros((num_labels,), jnp.float32),
        "layers": [],
    }
    for _ in range(L):
        params["layers"].append({
            # fused Q|K|V projection
            "wqkv": nrm(next(keys), (H, 3 * H)), "bqkv": jnp.zeros((3 * H,), jnp.float32),
            "wo": nrm(next(keys), (H, H)), "bo": jnp.zeros((H,), jnp.float32),
            "ln1_g": jnp.ones((H,), jnp.float32), "ln1_b": jnp.zeros((H,), jnp.float32),
            "w1": nrm(next(keys), (H, I)), "b1": jnp.zeros((I,), jnp.float32),
            "w2": nrm(next(keys), (I, H)), "b2": jnp.zeros((H,), jnp.float32),
            "ln2_g": jnp.ones((H,), jnp.float32), "ln2_b": jnp.zeros((H,), jnp.float32),
        })
    return params


# ------------------------------ model forward --------------------------------

def bert_qa_forward(params, input_ids, token_type_ids, attention_mask, *, H, nH):
    B, S = input_ids.shape
    dh = H // nH
    M = B * S

    # Embedding gathers are XLA glue (f32); the LN kernel emits bf16 activations
    # that flow through the whole encoder (matmuls accumulate in f32).
    emb = (params["word_emb"][input_ids]
           + params["pos_emb"][jnp.arange(S)][None, :, :]
           + params["type_emb"][token_type_ids])               # [B, S, H] f32
    h = layernorm(emb.reshape(M, H), params["emb_ln_g"], params["emb_ln_b"],
                  out_dtype=jnp.bfloat16)
    # embedding dropout + bert_drop are identity at inference (eval mode)

    mask_f = attention_mask.astype(jnp.float32).reshape(B, 1, S)
    scale = 1.0 / math.sqrt(dh)

    for layer in params["layers"]:
        qkv = dense(h, layer["wqkv"], layer["bqkv"])           # [M, 3H] fused QKV
        ctx = attention(qkv.reshape(B, S, 3 * H), mask_f, nH=nH, scale=scale)
        ctx = ctx.reshape(M, H)                                # free reshape, no transpose
        h = dense_add_layernorm(ctx, layer["wo"], layer["bo"], h,
                                layer["ln1_g"], layer["ln1_b"])
        ff = dense(h, layer["w1"], layer["b1"], activation="gelu")
        h = dense_add_layernorm(ff, layer["w2"], layer["b2"], h,
                                layer["ln2_g"], layer["ln2_b"])

    # sequence_output -> bert_drop (identity) -> qa_outputs Linear(H, 2).
    # Dout=2 would force masked 2-lane stores in Pallas, so this tiny projection
    # runs in plain XLA (per perf review).
    logits = h.astype(jnp.float32) @ params["qa_w"] + params["qa_b"]
    logits = logits.reshape(B, S, -1)
    # logits.split(1, dim=-1) + squeeze(-1)
    start_logits = logits[..., 0]
    end_logits = logits[..., 1]
    return start_logits, end_logits


# ----------------------------------- main ------------------------------------

if __name__ == "__main__":
    B, S = 2, 8            # batch, sequence length
    H, nH, I = 32, 4, 64   # hidden size, attention heads, FFN intermediate
    L = 2                  # number of transformer layers
    VOCAB, TYPE_VOCAB = 100, 2
    NUM_LABELS = 2

    key = jax.random.PRNGKey(0)
    kp, ki, kt = jax.random.split(key, 3)
    params = init_params(kp, vocab=VOCAB, type_vocab=TYPE_VOCAB, max_pos=S,
                         H=H, I=I, L=L, num_labels=NUM_LABELS)

    # prepare_model_input_fn / tokenizer is external preprocessing: build
    # token-id tensors directly (deterministic synthetic inputs).
    input_ids = jax.random.randint(ki, (B, S), 0, VOCAB, dtype=jnp.int32)
    token_type_ids = jax.random.randint(kt, (B, S), 0, TYPE_VOCAB, dtype=jnp.int32)
    attention_mask = jnp.ones((B, S), dtype=jnp.int32)

    fwd = jax.jit(functools.partial(bert_qa_forward, H=H, nH=nH))
    start_logits, end_logits = fwd(params, input_ids, token_type_ids, attention_mask)
    jax.block_until_ready((start_logits, end_logits))

    assert start_logits.shape == (B, S) and end_logits.shape == (B, S)
    assert start_logits.dtype == jnp.float32 and end_logits.dtype == jnp.float32
    assert bool(jnp.all(jnp.isfinite(start_logits)))
    assert bool(jnp.all(jnp.isfinite(end_logits)))
    print("KERNEL_OK")
</pallas_src>

<mosaic_0001>
module attributes {stable_mosaic.version = 11 : i64} {
  func.func @_dense_kernel(%arg0: i32, %arg1: memref<16x32xbf16, #tpu.memory_space<vmem>>, %arg2: memref<32x96xbf16, #tpu.memory_space<vmem>>, %arg3: memref<1x96xf32, #tpu.memory_space<vmem>>, %arg4: memref<16x96xbf16, #tpu.memory_space<vmem>>) attributes {dimension_semantics = [#tpu.dimension_semantics<parallel>], iteration_bounds = array<i64: 1>, scalar_prefetch = 0 : i64, scratch_operands = 0 : i64, tpu.core_type = #tpu.core_type<tc>, window_params = [{transform_indices = @transform_0, window_bounds = array<i64: 16, 32>}, {pipeline_mode = #tpu.pipeline_mode<synchronous>, transform_indices = @transform_1, window_bounds = array<i64: 32, 96>}, {pipeline_mode = #tpu.pipeline_mode<synchronous>, transform_indices = @transform_2, window_bounds = array<i64: 1, 96>}, {transform_indices = @transform_3, window_bounds = array<i64: 16, 96>}]} {
    %c0 = arith.constant 0 : index
    %c0_0 = arith.constant 0 : index
    %0 = vector.load %arg1[%c0, %c0_0] : memref<16x32xbf16, #tpu.memory_space<vmem>>, vector<16x32xbf16>
    %c0_1 = arith.constant 0 : index
    %c0_2 = arith.constant 0 : index
    %1 = vector.load %arg2[%c0_1, %c0_2] : memref<32x96xbf16, #tpu.memory_space<vmem>>, vector<32x96xbf16>
    %cst = arith.constant dense<0.000000e+00> : vector<16x96xf32>
    %2 = tpu.matmul %0, %1, %cst {dimension_numbers = #tpu.dot_dimension_numbers<[1], [0], [0], [1], [0, 0, 1, 1], [], []>} : vector<16x32xbf16>, vector<32x96xbf16>, vector<16x96xf32> -> vector<16x96xf32>
    %c0_3 = arith.constant 0 : index
    %c0_4 = arith.constant 0 : index
    %3 = vector.load %arg3[%c0_3, %c0_4] : memref<1x96xf32, #tpu.memory_space<vmem>>, vector<1x96xf32>
    %4 = vector.broadcast %3 : vector<1x96xf32> to vector<16x96xf32>
    %5 = arith.addf %2, %4 : vector<16x96xf32>
    %6 = arith.truncf %5 : vector<16x96xf32> to vector<16x96xbf16>
    %c0_5 = arith.constant 0 : index
    %c0_6 = arith.constant 0 : index
    %7 = vector.load %arg4[%c0_5, %c0_6] : memref<16x96xbf16, #tpu.memory_space<vmem>>, vector<16x96xbf16>
    tpu.vector_store %arg4[%c0_5, %c0_6], %6 {strides = array<i32>} : memref<16x96xbf16, #tpu.memory_space<vmem>>, vector<16x96xbf16>,
    return
  }
  func.func @transform_0(%arg0: i32) -> (i32, i32) {
    %c0_i32 = arith.constant 0 : i32
    %c0_i32_0 = arith.constant 0 : i32
    return %arg0, %c0_i32 : i32, i32
  }
  func.func @transform_1(%arg0: i32) -> (i32, i32) {
    %c0_i32 = arith.constant 0 : i32
    %c0_i32_0 = arith.constant 0 : i32
    %c0_i32_1 = arith.constant 0 : i32
    return %c0_i32, %c0_i32_0 : i32, i32
  }
  func.func @transform_2(%arg0: i32) -> (i32, i32) {
    %c0_i32 = arith.constant 0 : i32
    %c0_i32_0 = arith.constant 0 : i32
    %c0_i32_1 = arith.constant 0 : i32
    return %c0_i32, %c0_i32_0 : i32, i32
  }
  func.func @transform_3(%arg0: i32) -> (i32, i32) {
    %c0_i32 = arith.constant 0 : i32
    %c0_i32_0 = arith.constant 0 : i32
    return %arg0, %c0_i32 : i32, i32
  }
}

module attributes {stable_mosaic.version = 11 : i64} {
  func.func @_ln_kernel(%arg0: i32, %arg1: memref<16x32xf32, #tpu.memory_space<vmem>>, %arg2: memref<1x32xf32, #tpu.memory_space<vmem>>, %arg3: memref<1x32xf32, #tpu.memory_space<vmem>>, %arg4: memref<16x32xbf16, #tpu.memory_space<vmem>>) attributes {dimension_semantics = [#tpu.dimension_semantics<parallel>], iteration_bounds = array<i64: 1>, scalar_prefetch = 0 : i64, scratch_operands = 0 : i64, tpu.core_type = #tpu.core_type<tc>, window_params = [{transform_indices = @transform_0, window_bounds = array<i64: 16, 32>}, {pipeline_mode = #tpu.pipeline_mode<synchronous>, transform_indices = @transform_1, window_bounds = array<i64: 1, 32>}, {pipeline_mode = #tpu.pipeline_mode<synchronous>, transform_indices = @transform_2, window_bounds = array<i64: 1, 32>}, {transform_indices = @transform_3, window_bounds = array<i64: 16, 32>}]} {
    %c0 = arith.constant 0 : index
    %c0_0 = arith.constant 0 : index
    %0 = vector.load %arg1[%c0, %c0_0] : memref<16x32xf32, #tpu.memory_space<vmem>>, vector<16x32xf32>
    %cst = arith.constant dense<0.000000e+00> : vector<16xf32>
    %1 = vector.multi_reduction <add>, %0, %cst [1] : vector<16x32xf32> to vector<16xf32>
    %2 = vector.shape_cast %1 : vector<16xf32> to vector<16x1xf32>
    %cst_1 = arith.constant 3.200000e+01 : f32
    %3 = vector.broadcast %cst_1 : f32 to vector<16x1xf32>
    %4 = arith.divf %2, %3 : vector<16x1xf32>
    %5 = vector.broadcast %4 : vector<16x1xf32> to vector<16x32xf32>
    %6 = arith.subf %0, %5 : vector<16x32xf32>
    %7 = arith.mulf %6, %6 : vector<16x32xf32>
    %cst_2 = arith.constant dense<0.000000e+00> : vector<16xf32>
    %8 = vector.multi_reduction <add>, %7, %cst_2 [1] : vector<16x32xf32> to vector<16xf32>
    %9 = vector.shape_cast %8 : vector<16xf32> to vector<16x1xf32>
    %cst_3 = arith.constant 3.200000e+01 : f32
    %10 = vector.broadcast %cst_3 : f32 to vector<16x1xf32>
    %11 = arith.divf %9, %10 : vector<16x1xf32>
    %12 = vector.broadcast %4 : vector<16x1xf32> to vector<16x32xf32>
    %13 = arith.subf %0, %12 : vector<16x32xf32>
    %cst_4 = arith.constant 9.99999996E-13 : f32
    %14 = vector.broadcast %cst_4 : f32 to vector<16x1xf32>
    %15 = arith.addf %11, %14 : vector<16x1xf32>
    %16 = math.rsqrt %15 : vector<16x1xf32>
    %17 = vector.broadcast %16 : vector<16x1xf32> to vector<16x32xf32>
    %18 = arith.mulf %13, %17 : vector<16x32xf32>
    %c0_5 = arith.constant 0 : index
    %c0_6 = arith.constant 0 : index
    %19 = vector.load %arg2[%c0_5, %c0_6] : memref<1x32xf32, #tpu.memory_space<vmem>>, vector<1x32xf32>
    %20 = vector.broadcast %19 : vector<1x32xf32> to vector<16x32xf32>
    %21 = arith.mulf %18, %20 : vector<16x32xf32>
    %c0_7 = arith.constant 0 : index
    %c0_8 = arith.constant 0 : index
    %22 = vector.load %arg3[%c0_7, %c0_8] : memref<1x32xf32, #tpu.memory_space<vmem>>, vector<1x32xf32>
    %23 = vector.broadcast %22 : vector<1x32xf32> to vector<16x32xf32>
    %24 = arith.addf %21, %23 : vector<16x32xf32>
    %25 = arith.truncf %24 : vector<16x32xf32> to vector<16x32xbf16>
    %c0_9 = arith.constant 0 : index
    %c0_10 = arith.constant 0 : index
    %26 = vector.load %arg4[%c0_9, %c0_10] : memref<16x32xbf16, #tpu.memory_space<vmem>>, vector<16x32xbf16>
    tpu.vector_store %arg4[%c0_9, %c0_10], %25 {strides = array<i32>} : memref<16x32xbf16, #tpu.memory_space<vmem>>, vector<16x32xbf16>,
    return
  }
  func.func @transform_0(%arg0: i32) -> (i32, i32) {
    %c0_i32 = arith.constant 0 : i32
    %c0_i32_0 = arith.constant 0 : i32
    return %arg0, %c0_i32 : i32, i32
  }
  func.func @transform_1(%arg0: i32) -> (i32, i32) {
    %c0_i32 = arith.constant 0 : i32
    %c0_i32_0 = arith.constant 0 : i32
    %c0_i32_1 = arith.constant 0 : i32
    return %c0_i32, %c0_i32_0 : i32, i32
  }
  func.func @transform_2(%arg0: i32) -> (i32, i32) {
    %c0_i32 = arith.constant 0 : i32
    %c0_i32_0 = arith.constant 0 : i32
    %c0_i32_1 = arith.constant 0 : i32
    return %c0_i32, %c0_i32_0 : i32, i32
  }
  func.func @transform_3(%arg0: i32) -> (i32, i32) {
    %c0_i32 = arith.constant 0 : i32
    %c0_i32_0 = arith.constant 0 : i32
    return %arg0, %c0_i32 : i32, i32
  }
}

module attributes {stable_mosaic.version = 11 : i64} {
  func.func @_dense_add_ln_kernel(%arg0: i32, %arg1: memref<16x32xbf16, #tpu.memory_space<vmem>>, %arg2: memref<32x32xbf16, #tpu.memory_space<vmem>>, %arg3: memref<1x32xf32, #tpu.memory_space<vmem>>, %arg4: memref<16x32xbf16, #tpu.memory_space<vmem>>, %arg5: memref<1x32xf32, #tpu.memory_space<vmem>>, %arg6: memref<1x32xf32, #tpu.memory_space<vmem>>, %arg7: memref<16x32xbf16, #tpu.memory_space<vmem>>) attributes {dimension_semantics = [#tpu.dimension_semantics<parallel>], iteration_bounds = array<i64: 1>, scalar_prefetch = 0 : i64, scratch_operands = 0 : i64, tpu.core_type = #tpu.core_type<tc>, window_params = [{transform_indices = @transform_0, window_bounds = array<i64: 16, 32>}, {pipeline_mode = #tpu.pipeline_mode<synchronous>, transform_indices = @transform_1, window_bounds = array<i64: 32, 32>}, {pipeline_mode = #tpu.pipeline_mode<synchronous>, transform_indices = @transform_2, window_bounds = array<i64: 1, 32>}, {transform_indices = @transform_3, window_bounds = array<i64: 16, 32>}, {pipeline_mode = #tpu.pipeline_mode<synchronous>, transform_indices = @transform_4, window_bounds = array<i64: 1, 32>}, {pipeline_mode = #tpu.pipeline_mode<synchronous>, transform_indices = @transform_5, window_bounds = array<i64: 1, 32>}, {transform_indices = @transform_6, window_bounds = array<i64: 16, 32>}]} {
    %c0 = arith.constant 0 : index
    %c0_0 = arith.constant 0 : index
    %0 = vector.load %arg1[%c0, %c0_0] : memref<16x32xbf16, #tpu.memory_space<vmem>>, vector<16x32xbf16>
    %c0_1 = arith.constant 0 : index
    %c0_2 = arith.constant 0 : index
    %1 = vector.load %arg2[%c0_1, %c0_2] : memref<32x32xbf16, #tpu.memory_space<vmem>>, vector<32x32xbf16>
    %cst = arith.constant dense<0.000000e+00> : vector<16x32xf32>
    %2 = tpu.matmul %0, %1, %cst {dimension_numbers = #tpu.dot_dimension_numbers<[1], [0], [0], [1], [0, 0, 1, 1], [], []>} : vector<16x32xbf16>, vector<32x32xbf16>, vector<16x32xf32> -> vector<16x32xf32>
    %c0_3 = arith.constant 0 : index
    %c0_4 = arith.constant 0 : index
    %3 = vector.load %arg3[%c0_3, %c0_4] : memref<1x32xf32, #tpu.memory_space<vmem>>, vector<1x32xf32>
    %4 = vector.broadcast %3 : vector<1x32xf32> to vector<16x32xf32>
    %5 = arith.addf %2, %4 : vector<16x32xf32>
    %c0_5 = arith.constant 0 : index
    %c0_6 = arith.constant 0 : index
    %6 = vector.load %arg4[%c0_5, %c0_6] : memref<16x32xbf16, #tpu.memory_space<vmem>>, vector<16x32xbf16>
    %7 = arith.extf %6 : vector<16x32xbf16> to vector<16x32xf32>
    %8 = arith.addf %5, %7 : vector<16x32xf32>
    %cst_7 = arith.constant dense<0.000000e+00> : vector<16xf32>
    %9 = vector.multi_reduction <add>, %8, %cst_7 [1] : vector<16x32xf32> to vector<16xf32>
    %10 = vector.shape_cast %9 : vector<16xf32> to vector<16x1xf32>
    %cst_8 = arith.constant 3.200000e+01 : f32
    %11 = vector.broadcast %cst_8 : f32 to vector<16x1xf32>
    %12 = arith.divf %10, %11 : vector<16x1xf32>
    %13 = vector.broadcast %12 : vector<16x1xf32> to vector<16x32xf32>
    %14 = arith.subf %8, %13 : vector<16x32xf32>
    %15 = arith.mulf %14, %14 : vector<16x32xf32>
    %cst_9 = arith.constant dense<0.000000e+00> : vector<16xf32>
    %16 = vector.multi_reduction <add>, %15, %cst_9 [1] : vector<16x32xf32> to vector<16xf32>
    %17 = vector.shape_cast %16 : vector<16xf32> to vector<16x1xf32>
    %cst_10 = arith.constant 3.200000e+01 : f32
    %18 = vector.broadcast %cst_10 : f32 to vector<16x1xf32>
    %19 = arith.divf %17, %18 : vector<16x1xf32>
    %20 = vector.broadcast %12 : vector<16x1xf32> to vector<16x32xf32>
    %21 = arith.subf %8, %20 : vector<16x32xf32>
    %cst_11 = arith.constant 9.99999996E-13 : f32
    %22 = vector.broadcast %cst_11 : f32 to vector<16x1xf32>
    %23 = arith.addf %19, %22 : vector<16x1xf32>
    %24 = math.rsqrt %23 : vector<16x1xf32>
    %25 = vector.broadcast %24 : vector<16x1xf32> to vector<16x32xf32>
    %26 = arith.mulf %21, %25 : vector<16x32xf32>
    %c0_12 = arith.constant 0 : index
    %c0_13 = arith.constant 0 : index
    %27 = vector.load %arg5[%c0_12, %c0_13] : memref<1x32xf32, #tpu.memory_space<vmem>>, vector<1x32xf32>
    %28 = vector.broadcast %27 : vector<1x32xf32> to vector<16x32xf32>
    %29 = arith.mulf %26, %28 : vector<16x32xf32>
    %c0_14 = arith.constant 0 : index
    %c0_15 = arith.constant 0 : index
    %30 = vector.load %arg6[%c0_14, %c0_15] : memref<1x32xf32, #tpu.memory_space<vmem>>, vector<1x32xf32>
    %31 = vector.broadcast %30 : vector<1x32xf32> to vector<16x32xf32>
    %32 = arith.addf %29, %31 : vector<16x32xf32>
    %33 = arith.truncf %32 : vector<16x32xf32> to vector<16x32xbf16>
    %c0_16 = arith.constant 0 : index
    %c0_17 = arith.constant 0 : index
    %34 = vector.load %arg7[%c0_16, %c0_17] : memref<16x32xbf16, #tpu.memory_space<vmem>>, vector<16x32xbf16>
    tpu.vector_store %arg7[%c0_16, %c0_17], %33 {strides = array<i32>} : memref<16x32xbf16, #tpu.memory_space<vmem>>, vector<16x32xbf16>,
    return
  }
  func.func @transform_0(%arg0: i32) -> (i32, i32) {
    %c0_i32 = arith.constant 0 : i32
    %c0_i32_0 = arith.constant 0 : i32
    return %arg0, %c0_i32 : i32, i32
  }
  func.func @transform_1(%arg0: i32) -> (i32, i32) {
    %c0_i32 = arith.constant 0 : i32
    %c0_i32_0 = arith.constant 0 : i32
    %c0_i32_1 = arith.constant 0 : i32
    return %c0_i32, %c0_i32_0 : i32, i32
  }
  func.func @transform_2(%arg0: i32) -> (i32, i32) {
    %c0_i32 = arith.constant 0 : i32
    %c0_i32_0 = arith.constant 0 : i32
    %c0_i32_1 = arith.constant 0 : i32
    return %c0_i32, %c0_i32_0 : i32, i32
  }
  func.func @transform_3(%arg0: i32) -> (i32, i32) {
    %c0_i32 = arith.constant 0 : i32
    %c0_i32_0 = arith.constant 0 : i32
    return %arg0, %c0_i32 : i32, i32
  }
  func.func @transform_4(%arg0: i32) -> (i32, i32) {
    %c0_i32 = arith.constant 0 : i32
    %c0_i32_0 = arith.constant 0 : i32
    %c0_i32_1 = arith.constant 0 : i32
    return %c0_i32, %c0_i32_0 : i32, i32
  }
  func.func @transform_5(%arg0: i32) -> (i32, i32) {
    %c0_i32 = arith.constant 0 : i32
    %c0_i32_0 = arith.constant 0 : i32
    %c0_i32_1 = arith.constant 0 : i32
    return %c0_i32, %c0_i32_0 : i32, i32
  }
  func.func @transform_6(%arg0: i32) -> (i32, i32) {
    %c0_i32 = arith.constant 0 : i32
    %c0_i32_0 = arith.constant 0 : i32
    return %arg0, %c0_i32 : i32, i32
  }
}

module attributes {stable_mosaic.version = 11 : i64} {
  func.func @_attn_kernel(%arg0: i32, %arg1: memref<1x8x96xbf16, #tpu.memory_space<vmem>>, %arg2: memref<1x1x8xf32, #tpu.memory_space<vmem>>, %arg3: memref<1x8x32xbf16, #tpu.memory_space<vmem>>) attributes {dimension_semantics = [#tpu.dimension_semantics<parallel>], iteration_bounds = array<i64: 2>, scalar_prefetch = 0 : i64, scratch_operands = 0 : i64, tpu.core_type = #tpu.core_type<tc>, window_params = [{transform_indices = @transform_0, window_bounds = array<i64: 1, 8, 96>}, {transform_indices = @transform_1, window_bounds = array<i64: 1, 1, 8>}, {transform_indices = @transform_2, window_bounds = array<i64: 1, 8, 32>}]} {
    %c0 = arith.constant 0 : index
    %c0_0 = arith.constant 0 : index
    %c0_1 = arith.constant 0 : index
    %0 = vector.load %arg1[%c0, %c0_0, %c0_1] : memref<1x8x96xbf16, #tpu.memory_space<vmem>>, vector<1x8x96xbf16>
    %1 = vector.shape_cast %0 : vector<1x8x96xbf16> to vector<8x96xbf16>
    %c0_2 = arith.constant 0 : index
    %c0_3 = arith.constant 0 : index
    %c0_4 = arith.constant 0 : index
    %2 = vector.load %arg2[%c0_2, %c0_3, %c0_4] : memref<1x1x8xf32, #tpu.memory_space<vmem>>, vector<1x1x8xf32>
    %3 = vector.shape_cast %2 : vector<1x1x8xf32> to vector<8xf32>
    %cst = arith.constant 1.000000e+00 : f32
    %4 = vector.broadcast %cst : f32 to vector<8xf32>
    %5 = arith.subf %4, %3 : vector<8xf32>
    %cst_5 = arith.constant -1.000000e+04 : f32
    %6 = vector.broadcast %cst_5 : f32 to vector<8xf32>
    %7 = arith.mulf %5, %6 : vector<8xf32>
    %8 = vector.shape_cast %7 : vector<8xf32> to vector<1x8xf32>
    %9 = vector.extract_strided_slice %1 {offsets = [0, 0], sizes = [8, 8], strides = [1, 1]} : vector<8x96xbf16> to vector<8x8xbf16>
    %10 = vector.extract_strided_slice %1 {offsets = [0, 32], sizes = [8, 8], strides = [1, 1]} : vector<8x96xbf16> to vector<8x8xbf16>
    %11 = vector.extract_strided_slice %1 {offsets = [0, 64], sizes = [8, 8], strides = [1, 1]} : vector<8x96xbf16> to vector<8x8xbf16>
    %cst_6 = arith.constant dense<0.000000e+00> : vector<8x8xf32>
    %12 = tpu.matmul %9, %10, %cst_6 {dimension_numbers = #tpu.dot_dimension_numbers<[1], [1], [0], [0], [0, 0, 1, 0], [], []>} : vector<8x8xbf16>, vector<8x8xbf16>, vector<8x8xf32> -> vector<8x8xf32>
    %cst_7 = arith.constant 0.353553385 : f32
    %13 = vector.broadcast %cst_7 : f32 to vector<8x8xf32>
    %14 = arith.mulf %12, %13 : vector<8x8xf32>
    %15 = vector.broadcast %8 : vector<1x8xf32> to vector<8x8xf32>
    %16 = arith.addf %14, %15 : vector<8x8xf32>
    %cst_8 = arith.constant dense<0xFF800000> : vector<8xf32>
    %17 = vector.multi_reduction <maximumf>, %16, %cst_8 [1] : vector<8x8xf32> to vector<8xf32>
    %18 = vector.shape_cast %17 : vector<8xf32> to vector<8x1xf32>
    %19 = vector.broadcast %18 : vector<8x1xf32> to vector<8x8xf32>
    %20 = arith.subf %16, %19 : vector<8x8xf32>
    %21 = math.exp %20 : vector<8x8xf32>
    %cst_9 = arith.constant dense<0.000000e+00> : vector<8xf32>
    %22 = vector.multi_reduction <add>, %21, %cst_9 [1] : vector<8x8xf32> to vector<8xf32>
    %23 = vector.shape_cast %22 : vector<8xf32> to vector<8x1xf32>
    %24 = tpu.reciprocal %23 {approx = true} : vector<8x1xf32> -> vector<8x1xf32>
    %25 = vector.broadcast %24 : vector<8x1xf32> to vector<8x8xf32>
    %26 = arith.mulf %21, %25 : vector<8x8xf32>
    %27 = arith.truncf %26 : vector<8x8xf32> to vector<8x8xbf16>
    %cst_10 = arith.constant dense<0.000000e+00> : vector<8x8xf32>
    %28 = tpu.matmul %27, %11, %cst_10 {dimension_numbers = #tpu.dot_dimension_numbers<[1], [0], [0], [1], [0, 0, 1, 1], [], []>} : vector<8x8xbf16>, vector<8x8xbf16>, vector<8x8xf32> -> vector<8x8xf32>
    %29 = vector.extract_strided_slice %1 {offsets = [0, 8], sizes = [8, 8], strides = [1, 1]} : vector<8x96xbf16> to vector<8x8xbf16>
    %30 = vector.extract_strided_slice %1 {offsets = [0, 40], sizes = [8, 8], strides = [1, 1]} : vector<8x96xbf16> to vector<8x8xbf16>
    %31 = vector.extract_strided_slice %1 {offsets = [0, 72], sizes = [8, 8], strides = [1, 1]} : vector<8x96xbf16> to vector<8x8xbf16>
    %cst_11 = arith.constant dense<0.000000e+00> : vector<8x8xf32>
    %32 = tpu.matmul %29, %30, %cst_11 {dimension_numbers = #tpu.dot_dimension_numbers<[1], [1], [0], [0], [0, 0, 1, 0], [], []>} : vector<8x8xbf16>, vector<8x8xbf16>, vector<8x8xf32> -> vector<8x8xf32>
    %cst_12 = arith.constant 0.353553385 : f32
    %33 = vector.broadcast %cst_12 : f32 to vector<8x8xf32>
    %34 = arith.mulf %32, %33 : vector<8x8xf32>
    %35 = vector.broadcast %8 : vector<1x8xf32> to vector<8x8xf32>
    %36 = arith.addf %34, %35 : vector<8x8xf32>
    %cst_13 = arith.constant dense<0xFF800000> : vector<8xf32>
    %37 = vector.multi_reduction <maximumf>, %36, %cst_13 [1] : vector<8x8xf32> to vector<8xf32>
    %38 = vector.shape_cast %37 : vector<8xf32> to vector<8x1xf32>
    %39 = vector.broadcast %38 : vector<8x1xf32> to vector<8x8xf32>
    %40 = arith.subf %36, %39 : vector<8x8xf32>
    %41 = math.exp %40 : vector<8x8xf32>
    %cst_14 = arith.constant dense<0.000000e+00> : vector<8xf32>
    %42 = vector.multi_reduction <add>, %41, %cst_14 [1] : vector<8x8xf32> to vector<8xf32>
    %43 = vector.shape_cast %42 : vector<8xf32> to vector<8x1xf32>
    %44 = tpu.reciprocal %43 {approx = true} : vector<8x1xf32> -> vector<8x1xf32>
    %45 = vector.broadcast %44 : vector<8x1xf32> to vector<8x8xf32>
    %46 = arith.mulf %41, %45 : vector<8x8xf32>
    %47 = arith.truncf %46 : vector<8x8xf32> to vector<8x8xbf16>
    %cst_15 = arith.constant dense<0.000000e+00> : vector<8x8xf32>
    %48 = tpu.matmul %47, %31, %cst_15 {dimension_numbers = #tpu.dot_dimension_numbers<[1], [0], [0], [1], [0, 0, 1, 1], [], []>} : vector<8x8xbf16>, vector<8x8xbf16>, vector<8x8xf32> -> vector<8x8xf32>
    %49 = vector.extract_strided_slice %1 {offsets = [0, 16], sizes = [8, 8], strides = [1, 1]} : vector<8x96xbf16> to vector<8x8xbf16>
    %50 = vector.extract_strided_slice %1 {offsets = [0, 48], sizes = [8, 8], strides = [1, 1]} : vector<8x96xbf16> to vector<8x8xbf16>
    %51 = vector.extract_strided_slice %1 {offsets = [0, 80], sizes = [8, 8], strides = [1, 1]} : vector<8x96xbf16> to vector<8x8xbf16>
    %cst_16 = arith.constant dense<0.000000e+00> : vector<8x8xf32>
    %52 = tpu.matmul %49, %50, %cst_16 {dimension_numbers = #tpu.dot_dimension_numbers<[1], [1], [0], [0], [0, 0, 1, 0], [], []>} : vector<8x8xbf16>, vector<8x8xbf16>, vector<8x8xf32> -> vector<8x8xf32>
    %cst_17 = arith.constant 0.353553385 : f32
    %53 = vector.broadcast %cst_17 : f32 to vector<8x8xf32>
    %54 = arith.mulf %52, %53 : vector<8x8xf32>
    %55 = vector.broadcast %8 : vector<1x8xf32> to vector<8x8xf32>
    %56 = arith.addf %54, %55 : vector<8x8xf32>
    %cst_18 = arith.constant dense<0xFF800000> : vector<8xf32>
    %57 = vector.multi_reduction <maximumf>, %56, %cst_18 [1] : vector<8x8xf32> to vector<8xf32>
    %58 = vector.shape_cast %57 : vector<8xf32> to vector<8x1xf32>
    %59 = vector.broadcast %58 : vector<8x1xf32> to vector<8x8xf32>
    %60 = arith.subf %56, %59 : vector<8x8xf32>
    %61 = math.exp %60 : vector<8x8xf32>
    %cst_19 = arith.constant dense<0.000000e+00> : vector<8xf32>
    %62 = vector.multi_reduction <add>, %61, %cst_19 [1] : vector<8x8xf32> to vector<8xf32>
    %63 = vector.shape_cast %62 : vector<8xf32> to vector<8x1xf32>
    %64 = tpu.reciprocal %63 {approx = true} : vector<8x1xf32> -> vector<8x1xf32>
    %65 = vector.broadcast %64 : vector<8x1xf32> to vector<8x8xf32>
    %66 = arith.mulf %61, %65 : vector<8x8xf32>
    %67 = arith.truncf %66 : vector<8x8xf32> to vector<8x8xbf16>
    %cst_20 = arith.constant dense<0.000000e+00> : vector<8x8xf32>
    %68 = tpu.matmul %67, %51, %cst_20 {dimension_numbers = #tpu.dot_dimension_numbers<[1], [0], [0], [1], [0, 0, 1, 1], [], []>} : vector<8x8xbf16>, vector<8x8xbf16>, vector<8x8xf32> -> vector<8x8xf32>
    %69 = vector.extract_strided_slice %1 {offsets = [0, 24], sizes = [8, 8], strides = [1, 1]} : vector<8x96xbf16> to vector<8x8xbf16>
    %70 = vector.extract_strided_slice %1 {offsets = [0, 56], sizes = [8, 8], strides = [1, 1]} : vector<8x96xbf16> to vector<8x8xbf16>
    %71 = vector.extract_strided_slice %1 {offsets = [0, 88], sizes = [8, 8], strides = [1, 1]} : vector<8x96xbf16> to vector<8x8xbf16>
    %cst_21 = arith.constant dense<0.000000e+00> : vector<8x8xf32>
    %72 = tpu.matmul %69, %70, %cst_21 {dimension_numbers = #tpu.dot_dimension_numbers<[1], [1], [0], [0], [0, 0, 1, 0], [], []>} : vector<8x8xbf16>, vector<8x8xbf16>, vector<8x8xf32> -> vector<8x8xf32>
    %cst_22 = arith.constant 0.353553385 : f32
    %73 = vector.broadcast %cst_22 : f32 to vector<8x8xf32>
    %74 = arith.mulf %72, %73 : vector<8x8xf32>
    %75 = vector.broadcast %8 : vector<1x8xf32> to vector<8x8xf32>
    %76 = arith.addf %74, %75 : vector<8x8xf32>
    %cst_23 = arith.constant dense<0xFF800000> : vector<8xf32>
    %77 = vector.multi_reduction <maximumf>, %76, %cst_23 [1] : vector<8x8xf32> to vector<8xf32>
    %78 = vector.shape_cast %77 : vector<8xf32> to vector<8x1xf32>
    %79 = vector.broadcast %78 : vector<8x1xf32> to vector<8x8xf32>
    %80 = arith.subf %76, %79 : vector<8x8xf32>
    %81 = math.exp %80 : vector<8x8xf32>
    %cst_24 = arith.constant dense<0.000000e+00> : vector<8xf32>
    %82 = vector.multi_reduction <add>, %81, %cst_24 [1] : vector<8x8xf32> to vector<8xf32>
    %83 = vector.shape_cast %82 : vector<8xf32> to vector<8x1xf32>
    %84 = tpu.reciprocal %83 {approx = true} : vector<8x1xf32> -> vector<8x1xf32>
    %85 = vector.broadcast %84 : vector<8x1xf32> to vector<8x8xf32>
    %86 = arith.mulf %81, %85 : vector<8x8xf32>
    %87 = arith.truncf %86 : vector<8x8xf32> to vector<8x8xbf16>
    %cst_25 = arith.constant dense<0.000000e+00> : vector<8x8xf32>
    %88 = tpu.matmul %87, %71, %cst_25 {dimension_numbers = #tpu.dot_dimension_numbers<[1], [0], [0], [1], [0, 0, 1, 1], [], []>} : vector<8x8xbf16>, vector<8x8xbf16>, vector<8x8xf32> -> vector<8x8xf32>
    %89 = tpu.concatenate %28, %48, %68, %88 in 1 : vector<8x8xf32>, vector<8x8xf32>, vector<8x8xf32>, vector<8x8xf32> -> vector<8x32xf32>
    %90 = arith.truncf %89 : vector<8x32xf32> to vector<8x32xbf16>
    %c0_26 = arith.constant 0 : index
    %c0_27 = arith.constant 0 : index
    %c0_28 = arith.constant 0 : index
    %91 = vector.load %arg3[%c0_26, %c0_27, %c0_28] : memref<1x8x32xbf16, #tpu.memory_space<vmem>>, vector<1x8x32xbf16>
    %92 = vector.shape_cast %91 : vector<1x8x32xbf16> to vector<8x32xbf16>
    %93 = vector.shape_cast %90 : vector<8x32xbf16> to vector<1x8x32xbf16>
    tpu.vector_store %arg3[%c0_26, %c0_27, %c0_28], %93 {strides = array<i32>} : memref<1x8x32xbf16, #tpu.memory_space<vmem>>, vector<1x8x32xbf16>,
    return
  }
  func.func @transform_0(%arg0: i32) -> (i32, i32, i32) {
    %c0_i32 = arith.constant 0 : i32
    %c0_i32_0 = arith.constant 0 : i32
    %c0_i32_1 = arith.constant 0 : i32
    return %arg0, %c0_i32, %c0_i32_0 : i32, i32, i32
  }
  func.func @transform_1(%arg0: i32) -> (i32, i32, i32) {
    %c0_i32 = arith.constant 0 : i32
    %c0_i32_0 = arith.constant 0 : i32
    %c0_i32_1 = arith.constant 0 : i32
    return %arg0, %c0_i32, %c0_i32_0 : i32, i32, i32
  }
  func.func @transform_2(%arg0: i32) -> (i32, i32, i32) {
    %c0_i32 = arith.constant 0 : i32
    %c0_i32_0 = arith.constant 0 : i32
    %c0_i32_1 = arith.constant 0 : i32
    return %arg0, %c0_i32, %c0_i32_0 : i32, i32, i32
  }
}

module attributes {stable_mosaic.version = 11 : i64} {
  func.func @_dense_kernel(%arg0: i32, %arg1: memref<16x32xbf16, #tpu.memory_space<vmem>>, %arg2: memref<32x64xbf16, #tpu.memory_space<vmem>>, %arg3: memref<1x64xf32, #tpu.memory_space<vmem>>, %arg4: memref<16x64xbf16, #tpu.memory_space<vmem>>) attributes {dimension_semantics = [#tpu.dimension_semantics<parallel>], iteration_bounds = array<i64: 1>, scalar_prefetch = 0 : i64, scratch_operands = 0 : i64, tpu.core_type = #tpu.core_type<tc>, window_params = [{transform_indices = @transform_0, window_bounds = array<i64: 16, 32>}, {pipeline_mode = #tpu.pipeline_mode<synchronous>, transform_indices = @transform_1, window_bounds = array<i64: 32, 64>}, {pipeline_mode = #tpu.pipeline_mode<synchronous>, transform_indices = @transform_2, window_bounds = array<i64: 1, 64>}, {transform_indices = @transform_3, window_bounds = array<i64: 16, 64>}]} {
    %c0 = arith.constant 0 : index
    %c0_0 = arith.constant 0 : index
    %0 = vector.load %arg1[%c0, %c0_0] : memref<16x32xbf16, #tpu.memory_space<vmem>>, vector<16x32xbf16>
    %c0_1 = arith.constant 0 : index
    %c0_2 = arith.constant 0 : index
    %1 = vector.load %arg2[%c0_1, %c0_2] : memref<32x64xbf16, #tpu.memory_space<vmem>>, vector<32x64xbf16>
    %cst = arith.constant dense<0.000000e+00> : vector<16x64xf32>
    %2 = tpu.matmul %0, %1, %cst {dimension_numbers = #tpu.dot_dimension_numbers<[1], [0], [0], [1], [0, 0, 1, 1], [], []>} : vector<16x32xbf16>, vector<32x64xbf16>, vector<16x64xf32> -> vector<16x64xf32>
    %c0_3 = arith.constant 0 : index
    %c0_4 = arith.constant 0 : index
    %3 = vector.load %arg3[%c0_3, %c0_4] : memref<1x64xf32, #tpu.memory_space<vmem>>, vector<1x64xf32>
    %4 = vector.broadcast %3 : vector<1x64xf32> to vector<16x64xf32>
    %5 = arith.addf %2, %4 : vector<16x64xf32>
    %cst_5 = arith.constant 5.000000e-01 : f32
    %6 = vector.broadcast %cst_5 : f32 to vector<16x64xf32>
    %7 = arith.mulf %6, %5 : vector<16x64xf32>
    %cst_6 = arith.constant 4.471500e-02 : f32
    %8 = vector.broadcast %cst_6 : f32 to vector<16x64xf32>
    %9 = arith.mulf %8, %5 : vector<16x64xf32>
    %10 = arith.mulf %9, %5 : vector<16x64xf32>
    %11 = arith.mulf %10, %5 : vector<16x64xf32>
    %12 = arith.addf %5, %11 : vector<16x64xf32>
    %cst_7 = arith.constant 0.797884583 : f32
    %13 = vector.broadcast %cst_7 : f32 to vector<16x64xf32>
    %14 = arith.mulf %13, %12 : vector<16x64xf32>
    %15 = math.tanh %14 : vector<16x64xf32>
    %cst_8 = arith.constant 1.000000e+00 : f32
    %16 = vector.broadcast %cst_8 : f32 to vector<16x64xf32>
    %17 = arith.addf %16, %15 : vector<16x64xf32>
    %18 = arith.mulf %7, %17 : vector<16x64xf32>
    %19 = arith.truncf %18 : vector<16x64xf32> to vector<16x64xbf16>
    %c0_9 = arith.constant 0 : index
    %c0_10 = arith.constant 0 : index
    %20 = vector.load %arg4[%c0_9, %c0_10] : memref<16x64xbf16, #tpu.memory_space<vmem>>, vector<16x64xbf16>
    tpu.vector_store %arg4[%c0_9, %c0_10], %19 {strides = array<i32>} : memref<16x64xbf16, #tpu.memory_space<vmem>>, vector<16x64xbf16>,
    return
  }
  func.func @transform_0(%arg0: i32) -> (i32, i32) {
    %c0_i32 = arith.constant 0 : i32
    %c0_i32_0 = arith.constant 0 : i32
    return %arg0, %c0_i32 : i32, i32
  }
  func.func @transform_1(%arg0: i32) -> (i32, i32) {
    %c0_i32 = arith.constant 0 : i32
    %c0_i32_0 = arith.constant 0 : i32
    %c0_i32_1 = arith.constant 0 : i32
    return %c0_i32, %c0_i32_0 : i32, i32
  }
  func.func @transform_2(%arg0: i32) -> (i32, i32) {
    %c0_i32 = arith.constant 0 : i32
    %c0_i32_0 = arith.constant 0 : i32
    %c0_i32_1 = arith.constant 0 : i32
    return %c0_i32, %c0_i32_0 : i32, i32
  }
  func.func @transform_3(%arg0: i32) -> (i32, i32) {
    %c0_i32 = arith.constant 0 : i32
    %c0_i32_0 = arith.constant 0 : i32
    return %arg0, %c0_i32 : i32, i32
  }
}

module attributes {stable_mosaic.version = 11 : i64} {
  func.func @_dense_add_ln_kernel(%arg0: i32, %arg1: memref<16x64xbf16, #tpu.memory_space<vmem>>, %arg2: memref<64x32xbf16, #tpu.memory_space<vmem>>, %arg3: memref<1x32xf32, #tpu.memory_space<vmem>>, %arg4: memref<16x32xbf16, #tpu.memory_space<vmem>>, %arg5: memref<1x32xf32, #tpu.memory_space<vmem>>, %arg6: memref<1x32xf32, #tpu.memory_space<vmem>>, %arg7: memref<16x32xbf16, #tpu.memory_space<vmem>>) attributes {dimension_semantics = [#tpu.dimension_semantics<parallel>], iteration_bounds = array<i64: 1>, scalar_prefetch = 0 : i64, scratch_operands = 0 : i64, tpu.core_type = #tpu.core_type<tc>, window_params = [{transform_indices = @transform_0, window_bounds = array<i64: 16, 64>}, {pipeline_mode = #tpu.pipeline_mode<synchronous>, transform_indices = @transform_1, window_bounds = array<i64: 64, 32>}, {pipeline_mode = #tpu.pipeline_mode<synchronous>, transform_indices = @transform_2, window_bounds = array<i64: 1, 32>}, {transform_indices = @transform_3, window_bounds = array<i64: 16, 32>}, {pipeline_mode = #tpu.pipeline_mode<synchronous>, transform_indices = @transform_4, window_bounds = array<i64: 1, 32>}, {pipeline_mode = #tpu.pipeline_mode<synchronous>, transform_indices = @transform_5, window_bounds = array<i64: 1, 32>}, {transform_indices = @transform_6, window_bounds = array<i64: 16, 32>}]} {
    %c0 = arith.constant 0 : index
    %c0_0 = arith.constant 0 : index
    %0 = vector.load %arg1[%c0, %c0_0] : memref<16x64xbf16, #tpu.memory_space<vmem>>, vector<16x64xbf16>
    %c0_1 = arith.constant 0 : index
    %c0_2 = arith.constant 0 : index
    %1 = vector.load %arg2[%c0_1, %c0_2] : memref<64x32xbf16, #tpu.memory_space<vmem>>, vector<64x32xbf16>
    %cst = arith.constant dense<0.000000e+00> : vector<16x32xf32>
    %2 = tpu.matmul %0, %1, %cst {dimension_numbers = #tpu.dot_dimension_numbers<[1], [0], [0], [1], [0, 0, 1, 1], [], []>} : vector<16x64xbf16>, vector<64x32xbf16>, vector<16x32xf32> -> vector<16x32xf32>
    %c0_3 = arith.constant 0 : index
    %c0_4 = arith.constant 0 : index
    %3 = vector.load %arg3[%c0_3, %c0_4] : memref<1x32xf32, #tpu.memory_space<vmem>>, vector<1x32xf32>
    %4 = vector.broadcast %3 : vector<1x32xf32> to vector<16x32xf32>
    %5 = arith.addf %2, %4 : vector<16x32xf32>
    %c0_5 = arith.constant 0 : index
    %c0_6 = arith.constant 0 : index
    %6 = vector.load %arg4[%c0_5, %c0_6] : memref<16x32xbf16, #tpu.memory_space<vmem>>, vector<16x32xbf16>
    %7 = arith.extf %6 : vector<16x32xbf16> to vector<16x32xf32>
    %8 = arith.addf %5, %7 : vector<16x32xf32>
    %cst_7 = arith.constant dense<0.000000e+00> : vector<16xf32>
    %9 = vector.multi_reduction <add>, %8, %cst_7 [1] : vector<16x32xf32> to vector<16xf32>
    %10 = vector.shape_cast %9 : vector<16xf32> to vector<16x1xf32>
    %cst_8 = arith.constant 3.200000e+01 : f32
    %11 = vector.broadcast %cst_8 : f32 to vector<16x1xf32>
    %12 = arith.divf %10, %11 : vector<16x1xf32>
    %13 = vector.broadcast %12 : vector<16x1xf32> to vector<16x32xf32>
    %14 = arith.subf %8, %13 : vector<16x32xf32>
    %15 = arith.mulf %14, %14 : vector<16x32xf32>
    %cst_9 = arith.constant dense<0.000000e+00> : vector<16xf32>
    %16 = vector.multi_reduction <add>, %15, %cst_9 [1] : vector<16x32xf32> to vector<16xf32>
    %17 = vector.shape_cast %16 : vector<16xf32> to vector<16x1xf32>
    %cst_10 = arith.constant 3.200000e+01 : f32
    %18 = vector.broadcast %cst_10 : f32 to vector<16x1xf32>
    %19 = arith.divf %17, %18 : vector<16x1xf32>
    %20 = vector.broadcast %12 : vector<16x1xf32> to vector<16x32xf32>
    %21 = arith.subf %8, %20 : vector<16x32xf32>
    %cst_11 = arith.constant 9.99999996E-13 : f32
    %22 = vector.broadcast %cst_11 : f32 to vector<16x1xf32>
    %23 = arith.addf %19, %22 : vector<16x1xf32>
    %24 = math.rsqrt %23 : vector<16x1xf32>
    %25 = vector.broadcast %24 : vector<16x1xf32> to vector<16x32xf32>
    %26 = arith.mulf %21, %25 : vector<16x32xf32>
    %c0_12 = arith.constant 0 : index
    %c0_13 = arith.constant 0 : index
    %27 = vector.load %arg5[%c0_12, %c0_13] : memref<1x32xf32, #tpu.memory_space<vmem>>, vector<1x32xf32>
    %28 = vector.broadcast %27 : vector<1x32xf32> to vector<16x32xf32>
    %29 = arith.mulf %26, %28 : vector<16x32xf32>
    %c0_14 = arith.constant 0 : index
    %c0_15 = arith.constant 0 : index
    %30 = vector.load %arg6[%c0_14, %c0_15] : memref<1x32xf32, #tpu.memory_space<vmem>>, vector<1x32xf32>
    %31 = vector.broadcast %30 : vector<1x32xf32> to vector<16x32xf32>
    %32 = arith.addf %29, %31 : vector<16x32xf32>
    %33 = arith.truncf %32 : vector<16x32xf32> to vector<16x32xbf16>
    %c0_16 = arith.constant 0 : index
    %c0_17 = arith.constant 0 : index
    %34 = vector.load %arg7[%c0_16, %c0_17] : memref<16x32xbf16, #tpu.memory_space<vmem>>, vector<16x32xbf16>
    tpu.vector_store %arg7[%c0_16, %c0_17], %33 {strides = array<i32>} : memref<16x32xbf16, #tpu.memory_space<vmem>>, vector<16x32xbf16>,
    return
  }
  func.func @transform_0(%arg0: i32) -> (i32, i32) {
    %c0_i32 = arith.constant 0 : i32
    %c0_i32_0 = arith.constant 0 : i32
    return %arg0, %c0_i32 : i32, i32
  }
  func.func @transform_1(%arg0: i32) -> (i32, i32) {
    %c0_i32 = arith.constant 0 : i32
    %c0_i32_0 = arith.constant 0 : i32
    %c0_i32_1 = arith.constant 0 : i32
    return %c0_i32, %c0_i32_0 : i32, i32
  }
  func.func @transform_2(%arg0: i32) -> (i32, i32) {
    %c0_i32 = arith.constant 0 : i32
    %c0_i32_0 = arith.constant 0 : i32
    %c0_i32_1 = arith.constant 0 : i32
    return %c0_i32, %c0_i32_0 : i32, i32
  }
  func.func @transform_3(%arg0: i32) -> (i32, i32) {
    %c0_i32 = arith.constant 0 : i32
    %c0_i32_0 = arith.constant 0 : i32
    return %arg0, %c0_i32 : i32, i32
  }
  func.func @transform_4(%arg0: i32) -> (i32, i32) {
    %c0_i32 = arith.constant 0 : i32
    %c0_i32_0 = arith.constant 0 : i32
    %c0_i32_1 = arith.constant 0 : i32
    return %c0_i32, %c0_i32_0 : i32, i32
  }
  func.func @transform_5(%arg0: i32) -> (i32, i32) {
    %c0_i32 = arith.constant 0 : i32
    %c0_i32_0 = arith.constant 0 : i32
    %c0_i32_1 = arith.constant 0 : i32
    return %c0_i32, %c0_i32_0 : i32, i32
  }
  func.func @transform_6(%arg0: i32) -> (i32, i32) {
    %c0_i32 = arith.constant 0 : i32
    %c0_i32_0 = arith.constant 0 : i32
    return %arg0, %c0_i32 : i32, i32
  }
}

</mosaic_0001>

<llo_original>
// kernel: bert_qa_forward.12
$region0: #{bert_qa_forward.12}
  #allocation0 [shape = 'u32[]', space=smem, size = 0x4, offset = 0x4, fixed_abs, tag = 'smem constant byte address 0x4 - core index']
  #allocation1 [shape = 'u32[72,128]{1,0:T(1,128)}', space=vmem, size = 0x9000, scoped, tag = 'internal scratch']
  %s0 = inlined_call_operand.vmem [shape: bf16[16,32], index: 0, kind: input, shape index: {}]
  %s1 = inlined_call_operand.vmem [shape: bf16[32,96], index: 1, kind: input, shape index: {}]
  %s2 = inlined_call_operand.vmem [shape: f32[1,96], index: 2, kind: input, shape index: {}]
  %s3 = inlined_call_operand.vmem [shape: bf16[16,96], index: 3, kind: output, shape index: {}]
  %s4 = sld [smem:[#allocation0]]
  $region22: #{bert_qa_forward.12} parent=0
    _
  %s6 = ssub.s32 1, %s4
  %s7 = scalar_select 0, %s6, %s4
  // Predicated region
  $region2: #{bert_qa_forward.12} parent=0 // pred_check
    _
  $region3: #{bert_qa_forward.12} parent=0 // pred_check_branch
    %9 = sbr.rel (0) target = $region5
  $region4: #{bert_qa_forward.12} parent=0 // pred_region
    _
  $region5: #{bert_qa_forward.12} parent=0 // pred_fallthru
    _
  // Predicated region
  $region6: #{bert_qa_forward.12} parent=0 // pred_check
    _
  $region7: #{bert_qa_forward.12} parent=0 // pred_check_branch
    %11 = sbr.rel (0) target = $region9
  $region8: #{bert_qa_forward.12} parent=0 // pred_region
    _
  $region9: #{bert_qa_forward.12} parent=0 // pred_fallthru
    _
  // Predicated region
  $region10: #{bert_qa_forward.12} parent=0 // pred_check
    _
  $region11: #{bert_qa_forward.12} parent=0 // pred_check_branch
    %13 = sbr.rel (0) target = $region13
  $region12: #{bert_qa_forward.12} parent=0 // pred_region
    _
  $region13: #{bert_qa_forward.12} parent=0 // pred_fallthru
    _
  %v15 = vld [vmem:[%s0] sm:$0xf]
  %v16 = vld [vmem:[%s0 + $0x4] sm:$0xf]
  %v17 = vld [vmem:[%s1] sm:$0xf]
  %v18 = vld [vmem:[%s1 + $0x4] sm:$0xf]
  %v19 = vld [vmem:[%s1 + $0x8] sm:$0xf]
  %v20 = vld [vmem:[%s1 + $0xc] sm:$0xf]
  %v21 = vld [vmem:[%s2] sm:$0x1]
  %v23 = vperm.slane %v21, 0
  %v27 = vunpack.c.l.b16 %v15
  %v28 = vunpack.c.l.b16 %v16
  %v29 = vpack.c.b16 %v28, %v27
  %v34 = vunpack.c.l.b16 %v17
  %v35 = vunpack.c.l.b16 %v18
  %v36 = vunpack.c.l.b16 %v19
  %v37 = vunpack.c.l.b16 %v20
  %v38 = vpack.c.b16 %v35, %v34
  %v39 = vpack.c.b16 %v37, %v36
  %vm42 = vcmask 261120
  %v44 = vsel %vm42, %v29, 0
  %46 = vmatpush.bf16.msra.mxu0 0
  %47 = vmatpush.bf16.msra.mxu0 0
  %48 = vmatpush.bf16.msra.mxu0 0
  %49 = vmatpush.bf16.msra.mxu0 0
  %50 = vmatpush.bf16.msra.mxu0 0
  %51 = vmatpush.bf16.msra.mxu0 0
  %52 = vmatpush.bf16.msra.mxu0 %v39
  %53 = vmatpush.bf16.msra.mxu0 %v38
  %54 = vmatmul.bf16.gmra.mxu0 %v44
  %v55 = vpop.f32.mrf.mxu0
  %v56 = vadd.f32 %v23, %v55
  %v57 = vpop.f32.mrf.mxu0
  %v58 = vadd.f32 %v23, %v57
  %59 = vdwg.mxu0
  %v60 = vpack.c.bf16 %v56, %v56
  %v61 = vpack.c.bf16 %v58, %v58
  %vm62 = vcmask 781312
  %63 = vst.msk [vmem:[%s3] sm:$0xf] %vm62, %v60
  %64 = vst.msk [vmem:[%s3 + $0x4] sm:$0xf] %vm62, %v61
  // Predicated region
  $region14: #{bert_qa_forward.12} parent=0 // pred_check
    _
  $region15: #{bert_qa_forward.12} parent=0 // pred_check_branch
    %66 = sbr.rel (0) target = $region17
  $region16: #{bert_qa_forward.12} parent=0 // pred_region
    _
  $region17: #{bert_qa_forward.12} parent=0 // pred_fallthru
    _
  // Predicated region
  $region18: #{bert_qa_forward.12} parent=0 // pred_check
    _
  $region19: #{bert_qa_forward.12} parent=0 // pred_check_branch
    %68 = sbr.rel (0) target = $region21
  $region20: #{bert_qa_forward.12} parent=0 // pred_region
    _
  $region21: #{bert_qa_forward.12} parent=0 // pred_fallthru
    _

// kernel: bert_qa_forward.11
$region0: #{bert_qa_forward.11}
  #allocation0 [shape = 'u32[]', space=smem, size = 0x4, offset = 0x4, fixed_abs, tag = 'smem constant byte address 0x4 - core index']
  #allocation1 [shape = 'u32[72,128]{1,0:T(1,128)}', space=vmem, size = 0x9000, scoped, tag = 'internal scratch']
  %s0 = inlined_call_operand.vmem [shape: f32[16,32], index: 0, kind: input, shape index: {}]
  %s1 = inlined_call_operand.vmem [shape: f32[1,32], index: 1, kind: input, shape index: {}]
  %s2 = inlined_call_operand.vmem [shape: f32[1,32], index: 2, kind: input, shape index: {}]
  %s3 = inlined_call_operand.vmem [shape: bf16[16,32], index: 3, kind: output, shape index: {}]
  %s4 = sld [smem:[#allocation0]]
  $region22: #{bert_qa_forward.11} parent=0
    _
  %s6 = ssub.s32 1, %s4
  %s7 = scalar_select 0, %s6, %s4
  // Predicated region
  $region2: #{bert_qa_forward.11} parent=0 // pred_check
    _
  $region3: #{bert_qa_forward.11} parent=0 // pred_check_branch
    %9 = sbr.rel (0) target = $region5
  $region4: #{bert_qa_forward.11} parent=0 // pred_region
    _
  $region5: #{bert_qa_forward.11} parent=0 // pred_fallthru
    _
  // Predicated region
  $region6: #{bert_qa_forward.11} parent=0 // pred_check
    _
  $region7: #{bert_qa_forward.11} parent=0 // pred_check_branch
    %11 = sbr.rel (0) target = $region9
  $region8: #{bert_qa_forward.11} parent=0 // pred_region
    _
  $region9: #{bert_qa_forward.11} parent=0 // pred_fallthru
    _
  // Predicated region
  $region10: #{bert_qa_forward.11} parent=0 // pred_check
    _
  $region11: #{bert_qa_forward.11} parent=0 // pred_check_branch
    %13 = sbr.rel (0) target = $region13
  $region12: #{bert_qa_forward.11} parent=0 // pred_region
    _
  $region13: #{bert_qa_forward.11} parent=0 // pred_fallthru
    _
  %v14 = vld [vmem:[%s0] sm:$0xff]
  %v15 = vld [vmem:[%s0 + $0x8] sm:$0xff]
  %vm16 = vcmask 261120
  %v17 = vsel %vm16, %v14, 0.0
  %18 = vadd.xlane.f32.xlu0 %v17
  %v19 = vpop.xlane.xlu0 %18
  %v20 = vsel %vm16, %v15, 0.0
  %21 = vadd.xlane.f32.xlu0 %v20
  %v22 = vpop.xlane.xlu0 %21
  %v23 = vrcp.pop 32.0
  %v24 = vmul.f32 32.0, %v23
  %v25 = vsub.f32 1.0, %v24
  %v26 = vmul.f32 %v23, %v25
  %v27 = vadd.f32 %v23, %v26
  %vm28 = vweird.f32 %v23
  %v29 = vsel %vm28, %v23, %v27
  %v30 = vmul.f32 %v19, %v29
  %v31 = vmul.f32 %v22, %v29
  %v32 = vsub.f32 %v14, %v30
  %v33 = vsub.f32 %v15, %v31
  %v34 = vmul.f32 %v32, %v32
  %v35 = vmul.f32 %v33, %v33
  %v36 = vsel %vm16, %v34, 0.0
  %37 = vadd.xlane.f32.xlu0 %v36
  %v38 = vpop.xlane.xlu0 %37
  %v39 = vsel %vm16, %v35, 0.0
  %40 = vadd.xlane.f32.xlu0 %v39
  %v41 = vpop.xlane.xlu0 %40
  %v42 = vmul.f32 %v38, %v29
  %v43 = vmul.f32 %v41, %v29
  %v44 = vadd.f32 %v42, 1e-12
  %v45 = vadd.f32 %v43, 1e-12
  %v46 = vrsqrt.pop %v44
  %v47 = vmul.f32 %v46, %v44
  %v48 = vmul.f32 %v47, %v46
  %v49 = vmul.f32 0.5, %v48
  %v50 = vsub.f32 1.5, %v49
  %v51 = vmul.f32 %v46, %v50
  %vm52 = vweird.f32 %v44
  %vm53 = vweird.f32 %v46
  %vm54 = vmor %vm52, %vm53
  %v55 = vsel %vm54, %v46, %v51
  %v56 = vrsqrt.pop %v45
  %v57 = vmul.f32 %v56, %v45
  %v58 = vmul.f32 %v57, %v56
  %v59 = vmul.f32 0.5, %v58
  %v60 = vsub.f32 1.5, %v59
  %v61 = vmul.f32 %v56, %v60
  %vm62 = vweird.f32 %v45
  %vm63 = vweird.f32 %v56
  %vm64 = vmor %vm62, %vm63
  %v65 = vsel %vm64, %v56, %v61
  %v66 = vmul.f32 %v32, %v55
  %v67 = vmul.f32 %v33, %v65
  %v68 = vld [vmem:[%s1] sm:$0x1]
  %v70 = vperm.slane %v68, 0
  %v72 = vmul.f32 %v66, %v70
  %v73 = vmul.f32 %v67, %v70
  %v74 = vld [vmem:[%s2] sm:$0x1]
  %v76 = vperm.slane %v74, 0
  %v78 = vadd.f32 %v72, %v76
  %v79 = vadd.f32 %v73, %v76
  %v80 = vpack.c.bf16 %v78, %v78
  %v81 = vpack.c.bf16 %v79, %v79
  %vm82 = vcmask 257024
  %83 = vst.msk [vmem:[%s3] sm:$0xf] %vm82, %v80
  %84 = vst.msk [vmem:[%s3 + $0x4] sm:$0xf] %vm82, %v81
  // Predicated region
  $region14: #{bert_qa_forward.11} parent=0 // pred_check
    _
  $region15: #{bert_qa_forward.11} parent=0 // pred_check_branch
    %86 = sbr.rel (0) target = $region17
  $region16: #{bert_qa_forward.11} parent=0 // pred_region
    _
  $region17: #{bert_qa_forward.11} parent=0 // pred_fallthru
    _
  // Predicated region
  $region18: #{bert_qa_forward.11} parent=0 // pred_check
    _
  $region19: #{bert_qa_forward.11} parent=0 // pred_check_branch
    %88 = sbr.rel (0) target = $region21
  $region20: #{bert_qa_forward.11} parent=0 // pred_region
    _
  $region21: #{bert_qa_forward.11} parent=0 // pred_fallthru
    _

// kernel: bert_qa_forward.14
$region0: #{bert_qa_forward.14}
  #allocation0 [shape = 'u32[]', space=smem, size = 0x4, offset = 0x4, fixed_abs, tag = 'smem constant byte address 0x4 - core index']
  #allocation1 [shape = 'u32[72,128]{1,0:T(1,128)}', space=vmem, size = 0x9000, scoped, tag = 'internal scratch']
  %s0 = inlined_call_operand.vmem [shape: bf16[16,32], index: 0, kind: input, shape index: {}]
  %s1 = inlined_call_operand.vmem [shape: bf16[32,32], index: 1, kind: input, shape index: {}]
  %s2 = inlined_call_operand.vmem [shape: f32[1,32], index: 2, kind: input, shape index: {}]
  %s3 = inlined_call_operand.vmem [shape: bf16[16,32], index: 3, kind: input, shape index: {}]
  %s4 = inlined_call_operand.vmem [shape: f32[1,32], index: 4, kind: input, shape index: {}]
  %s5 = inlined_call_operand.vmem [shape: f32[1,32], index: 5, kind: input, shape index: {}]
  %s6 = inlined_call_operand.vmem [shape: bf16[16,32], index: 6, kind: output, shape index: {}]
  %s7 = sld [smem:[#allocation0]]
  $region34: #{bert_qa_forward.14} parent=0
    _
  %s9 = ssub.s32 1, %s7
  %s10 = scalar_select 0, %s9, %s7
  // Predicated region
  $region2: #{bert_qa_forward.14} parent=0 // pred_check
    _
  $region3: #{bert_qa_forward.14} parent=0 // pred_check_branch
    %12 = sbr.rel (0) target = $region5
  $region4: #{bert_qa_forward.14} parent=0 // pred_region
    _
  $region5: #{bert_qa_forward.14} parent=0 // pred_fallthru
    _
  // Predicated region
  $region6: #{bert_qa_forward.14} parent=0 // pred_check
    _
  $region7: #{bert_qa_forward.14} parent=0 // pred_check_branch
    %14 = sbr.rel (0) target = $region9
  $region8: #{bert_qa_forward.14} parent=0 // pred_region
    _
  $region9: #{bert_qa_forward.14} parent=0 // pred_fallthru
    _
  // Predicated region
  $region10: #{bert_qa_forward.14} parent=0 // pred_check
    _
  $region11: #{bert_qa_forward.14} parent=0 // pred_check_branch
    %16 = sbr.rel (0) target = $region13
  $region12: #{bert_qa_forward.14} parent=0 // pred_region
    _
  $region13: #{bert_qa_forward.14} parent=0 // pred_fallthru
    _
  // Predicated region
  $region14: #{bert_qa_forward.14} parent=0 // pred_check
    _
  $region15: #{bert_qa_forward.14} parent=0 // pred_check_branch
    %18 = sbr.rel (0) target = $region17
  $region16: #{bert_qa_forward.14} parent=0 // pred_region
    _
  $region17: #{bert_qa_forward.14} parent=0 // pred_fallthru
    _
  // Predicated region
  $region18: #{bert_qa_forward.14} parent=0 // pred_check
    _
  $region19: #{bert_qa_forward.14} parent=0 // pred_check_branch
    %20 = sbr.rel (0) target = $region21
  $region20: #{bert_qa_forward.14} parent=0 // pred_region
    _
  $region21: #{bert_qa_forward.14} parent=0 // pred_fallthru
    _
  // Predicated region
  $region22: #{bert_qa_forward.14} parent=0 // pred_check
    _
  $region23: #{bert_qa_forward.14} parent=0 // pred_check_branch
    %22 = sbr.rel (0) target = $region25
  $region24: #{bert_qa_forward.14} parent=0 // pred_region
    _
  $region25: #{bert_qa_forward.14} parent=0 // pred_fallthru
    _
  %v24 = vld [vmem:[%s0] sm:$0xf]
  %v25 = vld [vmem:[%s0 + $0x4] sm:$0xf]
  %v26 = vld [vmem:[%s1] sm:$0xf]
  %v27 = vld [vmem:[%s1 + $0x4] sm:$0xf]
  %v28 = vld [vmem:[%s1 + $0x8] sm:$0xf]
  %v29 = vld [vmem:[%s1 + $0xc] sm:$0xf]
  %v30 = vld [vmem:[%s2] sm:$0x1]
  %v32 = vperm.slane %v30, 0
  %v36 = vunpack.c.l.b16 %v24
  %v37 = vunpack.c.l.b16 %v25
  %v38 = vpack.c.b16 %v37, %v36
  %v43 = vunpack.c.l.b16 %v26
  %v44 = vunpack.c.l.b16 %v27
  %v45 = vunpack.c.l.b16 %v28
  %v46 = vunpack.c.l.b16 %v29
  %v47 = vpack.c.b16 %v44, %v43
  %v48 = vpack.c.b16 %v46, %v45
  %vm51 = vcmask 261120
  %v53 = vsel %vm51, %v38, 0
  %55 = vmatpush.bf16.msra.mxu0 0
  %56 = vmatpush.bf16.msra.mxu0 0
  %57 = vmatpush.bf16.msra.mxu0 0
  %58 = vmatpush.bf16.msra.mxu0 0
  %59 = vmatpush.bf16.msra.mxu0 0
  %60 = vmatpush.bf16.msra.mxu0 0
  %61 = vmatpush.bf16.msra.mxu0 %v48
  %62 = vmatpush.bf16.msra.mxu0 %v47
  %63 = vmatmul.bf16.gmra.mxu0 %v53
  %v64 = vpop.f32.mrf.mxu0
  %v65 = vadd.f32 %v32, %v64
  %v66 = vpop.f32.mrf.mxu0
  %v67 = vadd.f32 %v32, %v66
  %68 = vdwg.mxu0
  %v69 = vld [vmem:[%s3] sm:$0xf]
  %v70 = vld [vmem:[%s3 + $0x4] sm:$0xf]
  %v71 = vunpack.c.l.bf16 %v69
  %v72 = vunpack.c.l.bf16 %v70
  %v73 = vadd.f32 %v65, %v71
  %v74 = vadd.f32 %v67, %v72
  %v75 = vsel %vm51, %v73, 0.0
  %76 = vadd.xlane.f32.xlu0 %v75
  %v77 = vpop.xlane.xlu0 %76
  %v78 = vsel %vm51, %v74, 0.0
  %79 = vadd.xlane.f32.xlu0 %v78
  %v80 = vpop.xlane.xlu0 %79
  %v81 = vrcp.pop 32.0
  %v82 = vmul.f32 32.0, %v81
  %v83 = vsub.f32 1.0, %v82
  %v84 = vmul.f32 %v81, %v83
  %v85 = vadd.f32 %v81, %v84
  %vm86 = vweird.f32 %v81
  %v87 = vsel %vm86, %v81, %v85
  %v88 = vmul.f32 %v77, %v87
  %v89 = vmul.f32 %v80, %v87
  %v90 = vsub.f32 %v73, %v88
  %v91 = vsub.f32 %v74, %v89
  %v92 = vmul.f32 %v90, %v90
  %v93 = vmul.f32 %v91, %v91
  %v94 = vsel %vm51, %v92, 0.0
  %95 = vadd.xlane.f32.xlu0 %v94
  %v96 = vpop.xlane.xlu0 %95
  %v97 = vsel %vm51, %v93, 0.0
  %98 = vadd.xlane.f32.xlu0 %v97
  %v99 = vpop.xlane.xlu0 %98
  %v100 = vmul.f32 %v96, %v87
  %v101 = vmul.f32 %v99, %v87
  %v102 = vadd.f32 %v100, 1e-12
  %v103 = vadd.f32 %v101, 1e-12
  %v104 = vrsqrt.pop %v102
  %v105 = vmul.f32 %v104, %v102
  %v106 = vmul.f32 %v105, %v104
  %v107 = vmul.f32 0.5, %v106
  %v108 = vsub.f32 1.5, %v107
  %v109 = vmul.f32 %v104, %v108
  %vm110 = vweird.f32 %v102
  %vm111 = vweird.f32 %v104
  %vm112 = vmor %vm110, %vm111
  %v113 = vsel %vm112, %v104, %v109
  %v114 = vrsqrt.pop %v103
  %v115 = vmul.f32 %v114, %v103
  %v116 = vmul.f32 %v115, %v114
  %v117 = vmul.f32 0.5, %v116
  %v118 = vsub.f32 1.5, %v117
  %v119 = vmul.f32 %v114, %v118
  %vm120 = vweird.f32 %v103
  %vm121 = vweird.f32 %v114
  %vm122 = vmor %vm120, %vm121
  %v123 = vsel %vm122, %v114, %v119
  %v124 = vmul.f32 %v90, %v113
  %v125 = vmul.f32 %v91, %v123
  %v126 = vld [vmem:[%s4] sm:$0x1]
  %v128 = vperm.slane %v126, 0
  %v130 = vmul.f32 %v124, %v128
  %v131 = vmul.f32 %v125, %v128
  %v132 = vld [vmem:[%s5] sm:$0x1]
  %v134 = vperm.slane %v132, 0
  %v136 = vadd.f32 %v130, %v134
  %v137 = vadd.f32 %v131, %v134
  %v138 = vpack.c.bf16 %v136, %v136
  %v139 = vpack.c.bf16 %v137, %v137
  %vm140 = vcmask 257024
  %141 = vst.msk [vmem:[%s6] sm:$0xf] %vm140, %v138
  %142 = vst.msk [vmem:[%s6 + $0x4] sm:$0xf] %vm140, %v139
  // Predicated region
  $region26: #{bert_qa_forward.14} parent=0 // pred_check
    _
  $region27: #{bert_qa_forward.14} parent=0 // pred_check_branch
    %144 = sbr.rel (0) target = $region29
  $region28: #{bert_qa_forward.14} parent=0 // pred_region
    _
  $region29: #{bert_qa_forward.14} parent=0 // pred_fallthru
    _
  // Predicated region
  $region30: #{bert_qa_forward.14} parent=0 // pred_check
    _
  $region31: #{bert_qa_forward.14} parent=0 // pred_check_branch
    %146 = sbr.rel (0) target = $region33
  $region32: #{bert_qa_forward.14} parent=0 // pred_region
    _
  $region33: #{bert_qa_forward.14} parent=0 // pred_fallthru
    _

// kernel: bert_qa_forward.13
$region0: #{bert_qa_forward.13}
  #allocation0 [shape = 'u32[]', space=smem, size = 0x4, offset = 0x4, fixed_abs, tag = 'smem constant byte address 0x4 - core index']
  #allocation1 [shape = 'u32[72,128]{1,0:T(1,128)}', space=vmem, size = 0x9000, scoped, tag = 'internal scratch']
  %s0 = inlined_call_operand.vmem [shape: bf16[2,8,96], index: 0, kind: input, shape index: {}]
  %s1 = inlined_call_operand.vmem [shape: f32[2,1,8], index: 1, kind: input, shape index: {}]
  %s2 = inlined_call_operand.vmem [shape: bf16[2,8,32], index: 2, kind: output, shape index: {}]
  %s3 = sld [smem:[#allocation0]]
  $region41: #{bert_qa_forward.13} parent=0
    _
  %s5 = ssub.s32 1, %s3
  %s6 = scalar_select 0, %s5, %s3
  loop: start=0, step=1, limit=4
  $region2: #{bert_qa_forward.13} parent=0 // loop_pre_header
    _
  $region3: #{bert_qa_forward.13} parent=0 // loop_header
    %s8 = sphi 0, %s12
    %p9 = scmp.ge.s32.totalorder %s8, 4
    %s18 = sphi 0, %s20
    %s21 = sphi 0, %s18
    %s22 = sphi 0, %s21
    %s38 = sphi 0, %s22
    %s44 = sphi 0, %s46
    %s47 = sphi 0, %s44
    %s48 = sphi 0, %s47
    %s64 = sphi 0, %s48
    %s70 = sphi 0, %s72
    %s73 = sphi 0, %s70
    %s74 = sphi 0, %s73
    %s90 = sphi 0, %s74
  $region4: #{bert_qa_forward.13} parent=0 // loop_header_branch
    %11 = sbr.rel (%p9) target = $region8
  $region5: #{bert_qa_forward.13} parent=0 // loop_body
    %s13 = ssub.s32 %s8, 1
    %s14 = ssub.s32 %s8, 2
    %s15 = sadd.s32 %s8, 1
    %s16 = ssub.s32 %s8, %s15
    %p17 = scmp.eq.s32.totalorder %s16, 0
    %s19 = sadd.s32 %s18, 1
    %s20 = scalar_select %p17, %s18, %s19
    %p23 = pneg %p17
    %p24 = scmp.eq.s32.totalorder %s8, 1
    %p25 = por %p23, %p24
    %p26 = scmp.ne.s32.totalorder %s18, %s21
    %p27 = scmp.eq.s32.totalorder %s8, 0
    %p28 = por %p26, %p27
    %p29 = scmp.ne.s32.totalorder %s18, %s21
    %p30 = scmp.eq.s32.totalorder %s13, 1
    %p31 = por %p29, %p30
    %p32 = scmp.ne.s32.totalorder %s21, %s22
    %p33 = scmp.eq.s32.totalorder %s13, 0
    %p34 = por %p32, %p33
    %p35 = scmp.ne.s32.totalorder %s21, %s22
    %p36 = scmp.eq.s32.totalorder %s14, 1
    %p37 = por %p35, %p36
    %p39 = scmp.ne.s32.totalorder %s22, %s38
    %p40 = scmp.eq.s32.totalorder %s14, 0
    %p41 = por %p39, %p40
    %s42 = ssub.s32 %s8, %s15
    %p43 = scmp.eq.s32.totalorder %s42, 0
    %s45 = sadd.s32 %s44, 1
    %s46 = scalar_select %p43, %s44, %s45
    %p49 = pneg %p43
    %p50 = scmp.eq.s32.totalorder %s8, 1
    %p51 = por %p49, %p50
    %p52 = scmp.ne.s32.totalorder %s44, %s47
    %p53 = scmp.eq.s32.totalorder %s8, 0
    %p54 = por %p52, %p53
    %p55 = scmp.ne.s32.totalorder %s44, %s47
    %p56 = scmp.eq.s32.totalorder %s13, 1
    %p57 = por %p55, %p56
    %p58 = scmp.ne.s32.totalorder %s47, %s48
    %p59 = scmp.eq.s32.totalorder %s13, 0
    %p60 = por %p58, %p59
    %p61 = scmp.ne.s32.totalorder %s47, %s48
    %p62 = scmp.eq.s32.totalorder %s14, 1
    %p63 = por %p61, %p62
    %p65 = scmp.ne.s32.totalorder %s48, %s64
    %p66 = scmp.eq.s32.totalorder %s14, 0
    %p67 = por %p65, %p66
    %s68 = ssub.s32 %s8, %s15
    %p69 = scmp.eq.s32.totalorder %s68, 0
    %s71 = sadd.s32 %s70, 1
    %s72 = scalar_select %p69, %s70, %s71
    %p75 = pneg %p69
    %p76 = scmp.eq.s32.totalorder %s8, 1
    %p77 = por %p75, %p76
    %p78 = scmp.ne.s32.totalorder %s70, %s73
    %p79 = scmp.eq.s32.totalorder %s8, 0
    %p80 = por %p78, %p79
    %p81 = scmp.ne.s32.totalorder %s70, %s73
    %p82 = scmp.eq.s32.totalorder %s13, 1
    %p83 = por %p81, %p82
    %p84 = scmp.ne.s32.totalorder %s73, %s74
    %p85 = scmp.eq.s32.totalorder %s13, 0
    %p86 = por %p84, %p85
    %p87 = scmp.ne.s32.totalorder %s73, %s74
    %p88 = scmp.eq.s32.totalorder %s14, 1
    %p89 = por %p87, %p88
    %p91 = scmp.ne.s32.totalorder %s74, %s90
    %p92 = scmp.eq.s32.totalorder %s14, 0
    %p93 = por %p91, %p92
    %p94 = scmp.le.s32.totalorder 1, %s8
    %p95 = scmp.lt.s32.totalorder %s8, 3
    %p96 = pnand %p94, %p95
    %p97 = pneg %p96
    // Predicated region
    $region9: #{bert_qa_forward.13} parent=5 // pred_check
      _
    $region10: #{bert_qa_forward.13} parent=5 // pred_check_branch
      %99 = sbr.rel (%p96) target = $region12
    $region11: #{bert_qa_forward.13} parent=5 // pred_region
      %s100 = ssub.s32 %s8, 1
    $region12: #{bert_qa_forward.13} parent=5 // pred_fallthru
      _
    %p101 = scmp.lt.s32.totalorder %s8, 2
    // Predicated region
    $region13: #{bert_qa_forward.13} parent=5 // pred_check
      %p102 = pneg %p101
    $region14: #{bert_qa_forward.13} parent=5 // pred_check_branch
      %104 = sbr.rel (%p102) target = $region16
    $region15: #{bert_qa_forward.13} parent=5 // pred_region
      // Predicated region
      $region17: #{bert_qa_forward.13} parent=15 // pred_check
        %p105 = pneg %p28
      $region18: #{bert_qa_forward.13} parent=15 // pred_check_branch
        %107 = sbr.rel (%p105) target = $region20
      $region19: #{bert_qa_forward.13} parent=15 // pred_region
        %p108 = scmp.lt.s32.totalorder %s8, 1
        %s109 = scalar_select %p108, %s8, 1
        %s110 = smul.addr %s109, 4
        %s111 = scalar_lea.vmem %s0, %s110
      $region20: #{bert_qa_forward.13} parent=15 // pred_fallthru
        _
      // Predicated region
      $region21: #{bert_qa_forward.13} parent=15 // pred_check
        %p112 = pneg %p54
      $region22: #{bert_qa_forward.13} parent=15 // pred_check_branch
        %114 = sbr.rel (%p112) target = $region24
      $region23: #{bert_qa_forward.13} parent=15 // pred_region
        %p115 = scmp.lt.s32.totalorder %s8, 1
        %s116 = scalar_select %p115, %s8, 1
        %s117 = scalar_lea.vmem %s1, %s116
      $region24: #{bert_qa_forward.13} parent=15 // pred_fallthru
        _
    $region16: #{bert_qa_forward.13} parent=5 // pred_fallthru
      _
    %p118 = scmp.le.s32.totalorder 1, %s8
    %p119 = scmp.lt.s32.totalorder %s8, 3
    %p120 = pnand %p118, %p119
    %p121 = pneg %p120
    // Predicated region
    $region25: #{bert_qa_forward.13} parent=5 // pred_check
      _
    $region26: #{bert_qa_forward.13} parent=5 // pred_check_branch
      %123 = sbr.rel (%p120) target = $region28
    $region27: #{bert_qa_forward.13} parent=5 // pred_region
      %s124 = ssub.s32 %s8, 1
      %p125 = scmp.lt.s32.totalorder %s13, 1
      %s126 = scalar_select %p125, %s13, 1
      %s127 = smul.addr %s126, 4
      %s128 = scalar_lea.vmem %s0, %s127
      %p129 = pneg %p34
      %p130 = pneg %p31
      %p131 = scmp.lt.s32.totalorder %s13, 1
      %s132 = scalar_select %p131, %s13, 1
      %s133 = scalar_lea.vmem %s1, %s132
      %p134 = pneg %p60
      %p135 = pneg %p57
      %p136 = pneg %p86
      %p137 = pneg %p83
      %p138 = scmp.lt.s32.totalorder %s13, 1
      %s139 = scalar_select %p138, %s13, 1
      %s140 = smul.addr %s139, 4
      %s141 = scalar_lea.vmem %s2, %s140
      %p142 = scmp.lt.s32.totalorder %s13, 1
      %s143 = scalar_select %p142, %s13, 1
      %s144 = smul.addr %s143, 4
      %s145 = scalar_lea.vmem %s0, %s144
      %p146 = scmp.lt.s32.totalorder %s13, 1
      %s147 = scalar_select %p146, %s13, 1
      %s148 = scalar_lea.vmem %s1, %s147
      %p149 = scmp.lt.s32.totalorder %s13, 1
      %s150 = scalar_select %p149, %s13, 1
      %s151 = smul.addr %s150, 4
      %s152 = scalar_lea.vmem %s2, %s151
      %v154 = vld [vmem:[%s145] sm:$0xf]
      %v155 = vld [vmem:[%s148] sm:$0x1]
      %v156 = vsub.f32 1.0, %v155
      %v157 = vmul.f32 %v156, -10000.0
      %v159 = vunpack.c.l.b16 %v154
      %v160 = vpack.c.b16 %v159, %v159
      %161 = vrot.lane.b32.xlu0 %v160, 96
      %v162 = vpop.permute.xlu0 %161
      %vm163 = vcmask 64512
      %v165 = vsel %vm163, %v154, 0
      %v168 = vsel %vm163, %v162, 0
      %170 = vmatpush.bf16.xpose.msra.mxu0 0
      %171 = vmatpush.bf16.xpose.msra.mxu0 0
      %172 = vmatpush.bf16.xpose.msra.mxu0 0
      %173 = vmatpush.bf16.xpose.msra.mxu0 0
      %174 = vmatpush.bf16.xpose.msra.mxu0 0
      %175 = vmatpush.bf16.xpose.msra.mxu0 0
      %176 = vmatpush.bf16.xpose.msra.mxu0 0
      %177 = vmatpush.bf16.xpose.msra.mxu0 %v168
      %178 = vmatmul.bf16.gmra.mxu0 %v165
      %v179 = vpop.f32.mrf.mxu0
      %v180 = vadd.f32 0.0, %v179
      %v181 = vpop.f32.mrf.mxu0
      %182 = vdwg.mxu0
      %v183 = vmul.f32 %v180, 0.35355338
      %v185 = vperm.slane %v157, 0
      %v187 = vadd.f32 %v183, %v185
      %v188 = vsel %vm163, %v187, -inf
      %189 = vmax.xlane.f32.xlu0 %v188
      %v190 = vpop.xlane.xlu0 %189
      %v191 = vsub.f32 %v187, %v190
      %v192 = vmul.f32 %v191, 1.442695
      %v193 = vpow.pop %v192
      %v194 = vsel %vm163, %v193, 0.0
      %195 = vadd.xlane.f32.xlu0 %v194
      %v196 = vpop.xlane.xlu0 %195
      %v197 = vrcp.pop %v196
      %v198 = vmul.f32 %v193, %v197
      %v199 = vpack.c.bf16 %v198, %v198
      %200 = vrot.lane.b32.xlu0 %v160, 64
      %v201 = vpop.permute.xlu0 %200
      %v203 = vsel %vm163, %v199, 0
      %vm205 = vcmask 1043456
      %v207 = vsel %vm205, %v201, 0
      %209 = vmatpush.bf16.msra.mxu0 0
      %210 = vmatpush.bf16.msra.mxu0 0
      %211 = vmatpush.bf16.msra.mxu0 0
      %212 = vmatpush.bf16.msra.mxu0 0
      %213 = vmatpush.bf16.msra.mxu0 0
      %214 = vmatpush.bf16.msra.mxu0 0
      %215 = vmatpush.bf16.msra.mxu0 0
      %216 = vmatpush.bf16.msra.mxu0 %v207
      %217 = vmatmul.bf16.gmra.mxu0 %v203
      %v218 = vpop.f32.mrf.mxu0
      %v219 = vadd.f32 0.0, %v218
      %v220 = vpop.f32.mrf.mxu0
      %221 = vdwg.mxu0
      %222 = vrot.lane.b32.xlu0 %v160, 120
      %v223 = vpop.permute.xlu0 %222
      %224 = vrot.lane.b32.xlu0 %v160, 88
      %v225 = vpop.permute.xlu0 %224
      %v227 = vsel %vm163, %v223, 0
      %v230 = vsel %vm163, %v225, 0
      %232 = vmatpush.bf16.xpose.msra.mxu0 0
      %233 = vmatpush.bf16.xpose.msra.mxu0 0
      %234 = vmatpush.bf16.xpose.msra.mxu0 0
      %235 = vmatpush.bf16.xpose.msra.mxu0 0
      %236 = vmatpush.bf16.xpose.msra.mxu0 0
      %237 = vmatpush.bf16.xpose.msra.mxu0 0
      %238 = vmatpush.bf16.xpose.msra.mxu0 0
      %239 = vmatpush.bf16.xpose.msra.mxu0 %v230
      %240 = vmatmul.bf16.gmra.mxu0 %v227
      %v241 = vpop.f32.mrf.mxu0
      %v242 = vadd.f32 0.0, %v241
      %v243 = vpop.f32.mrf.mxu0
      %244 = vdwg.mxu0
      %v245 = vmul.f32 %v242, 0.35355338
      %v246 = vadd.f32 %v245, %v185
      %v247 = vsel %vm163, %v246, -inf
      %248 = vmax.xlane.f32.xlu0 %v247
      %v249 = vpop.xlane.xlu0 %248
      %v250 = vsub.f32 %v246, %v249
      %v251 = vmul.f32 %v250, 1.442695
      %v252 = vpow.pop %v251
      %v253 = vsel %vm163, %v252, 0.0
      %254 = vadd.xlane.f32.xlu0 %v253
      %v255 = vpop.xlane.xlu0 %254
      %v256 = vrcp.pop %v255
      %v257 = vmul.f32 %v252, %v256
      %v258 = vpack.c.bf16 %v257, %v257
      %259 = vrot.lane.b32.xlu0 %v160, 56
      %v260 = vpop.permute.xlu0 %259
      %v262 = vsel %vm163, %v258, 0
      %v265 = vsel %vm205, %v260, 0
      %267 = vmatpush.bf16.msra.mxu0 0
      %268 = vmatpush.bf16.msra.mxu0 0
      %269 = vmatpush.bf16.msra.mxu0 0
      %270 = vmatpush.bf16.msra.mxu0 0
      %271 = vmatpush.bf16.msra.mxu0 0
      %272 = vmatpush.bf16.msra.mxu0 0
      %273 = vmatpush.bf16.msra.mxu0 0
      %274 = vmatpush.bf16.msra.mxu0 %v265
      %275 = vmatmul.bf16.gmra.mxu0 %v262
      %v276 = vpop.f32.mrf.mxu0
      %v277 = vadd.f32 0.0, %v276
      %v278 = vpop.f32.mrf.mxu0
      %279 = vdwg.mxu0
      %280 = vrot.lane.b32.xlu0 %v160, 112
      %v281 = vpop.permute.xlu0 %280
      %282 = vrot.lane.b32.xlu0 %v160, 80
      %v283 = vpop.permute.xlu0 %282
      %v285 = vsel %vm163, %v281, 0
      %v288 = vsel %vm163, %v283, 0
      %290 = vmatpush.bf16.xpose.msra.mxu0 0
      %291 = vmatpush.bf16.xpose.msra.mxu0 0
      %292 = vmatpush.bf16.xpose.msra.mxu0 0
      %293 = vmatpush.bf16.xpose.msra.mxu0 0
      %294 = vmatpush.bf16.xpose.msra.mxu0 0
      %295 = vmatpush.bf16.xpose.msra.mxu0 0
      %296 = vmatpush.bf16.xpose.msra.mxu0 0
      %297 = vmatpush.bf16.xpose.msra.mxu0 %v288
      %298 = vmatmul.bf16.gmra.mxu0 %v285
      %v299 = vpop.f32.mrf.mxu0
      %v300 = vadd.f32 0.0, %v299
      %v301 = vpop.f32.mrf.mxu0
      %302 = vdwg.mxu0
      %v303 = vmul.f32 %v300, 0.35355338
      %v304 = vadd.f32 %v303, %v185
      %v305 = vsel %vm163, %v304, -inf
      %306 = vmax.xlane.f32.xlu0 %v305
      %v307 = vpop.xlane.xlu0 %306
      %v308 = vsub.f32 %v304, %v307
      %v309 = vmul.f32 %v308, 1.442695
      %v310 = vpow.pop %v309
      %v311 = vsel %vm163, %v310, 0.0
      %312 = vadd.xlane.f32.xlu0 %v311
      %v313 = vpop.xlane.xlu0 %312
      %v314 = vrcp.pop %v313
      %v315 = vmul.f32 %v310, %v314
      %v316 = vpack.c.bf16 %v315, %v315
      %317 = vrot.lane.b32.xlu0 %v160, 48
      %v318 = vpop.permute.xlu0 %317
      %v320 = vsel %vm163, %v316, 0
      %v323 = vsel %vm205, %v318, 0
      %325 = vmatpush.bf16.msra.mxu0 0
      %326 = vmatpush.bf16.msra.mxu0 0
      %327 = vmatpush.bf16.msra.mxu0 0
      %328 = vmatpush.bf16.msra.mxu0 0
      %329 = vmatpush.bf16.msra.mxu0 0
      %330 = vmatpush.bf16.msra.mxu0 0
      %331 = vmatpush.bf16.msra.mxu0 0
      %332 = vmatpush.bf16.msra.mxu0 %v323
      %333 = vmatmul.bf16.gmra.mxu0 %v320
      %v334 = vpop.f32.mrf.mxu0
      %v335 = vadd.f32 0.0, %v334
      %v336 = vpop.f32.mrf.mxu0
      %337 = vdwg.mxu0
      %338 = vrot.lane.b32.xlu0 %v160, 104
      %v339 = vpop.permute.xlu0 %338
      %340 = vrot.lane.b32.xlu0 %v160, 72
      %v341 = vpop.permute.xlu0 %340
      %v343 = vsel %vm163, %v339, 0
      %v346 = vsel %vm163, %v341, 0
      %348 = vmatpush.bf16.xpose.msra.mxu0 0
      %349 = vmatpush.bf16.xpose.msra.mxu0 0
      %350 = vmatpush.bf16.xpose.msra.mxu0 0
      %351 = vmatpush.bf16.xpose.msra.mxu0 0
      %352 = vmatpush.bf16.xpose.msra.mxu0 0
      %353 = vmatpush.bf16.xpose.msra.mxu0 0
      %354 = vmatpush.bf16.xpose.msra.mxu0 0
      %355 = vmatpush.bf16.xpose.msra.mxu0 %v346
      %356 = vmatmul.bf16.gmra.mxu0 %v343
      %v357 = vpop.f32.mrf.mxu0
      %v358 = vadd.f32 0.0, %v357
      %v359 = vpop.f32.mrf.mxu0
      %360 = vdwg.mxu0
      %v361 = vmul.f32 %v358, 0.35355338
      %v362 = vadd.f32 %v361, %v185
      %v363 = vsel %vm163, %v362, -inf
      %364 = vmax.xlane.f32.xlu0 %v363
      %v365 = vpop.xlane.xlu0 %364
      %v366 = vsub.f32 %v362, %v365
      %v367 = vmul.f32 %v366, 1.442695
      %v368 = vpow.pop %v367
      %v369 = vsel %vm163, %v368, 0.0
      %370 = vadd.xlane.f32.xlu0 %v369
      %v371 = vpop.xlane.xlu0 %370
      %v372 = vrcp.pop %v371
      %v373 = vmul.f32 %v368, %v372
      %v374 = vpack.c.bf16 %v373, %v373
      %375 = vrot.lane.b32.xlu0 %v160, 40
      %v376 = vpop.permute.xlu0 %375
      %v378 = vsel %vm163, %v374, 0
      %v381 = vsel %vm205, %v376, 0
      %383 = vmatpush.bf16.msra.mxu0 0
      %384 = vmatpush.bf16.msra.mxu0 0
      %385 = vmatpush.bf16.msra.mxu0 0
      %386 = vmatpush.bf16.msra.mxu0 0
      %387 = vmatpush.bf16.msra.mxu0 0
      %388 = vmatpush.bf16.msra.mxu0 0
      %389 = vmatpush.bf16.msra.mxu0 0
      %390 = vmatpush.bf16.msra.mxu0 %v381
      %391 = vmatmul.bf16.gmra.mxu0 %v378
      %v392 = vpop.f32.mrf.mxu0
      %v393 = vadd.f32 0.0, %v392
      %v394 = vpop.f32.mrf.mxu0
      %395 = vdwg.mxu0
      %397 = vrot.lane.b32.xlu0 %v277, 8
      %v398 = vpop.permute.xlu0 %397
      %401 = vrot.lane.b32.xlu0 %v335, 16
      %v402 = vpop.permute.xlu0 %401
      %405 = vrot.lane.b32.xlu0 %v393, 24
      %v406 = vpop.permute.xlu0 %405
      %v408 = vsel %vm163, %v219, %v398
      %vm409 = vcmask 130048
      %v410 = vsel %vm409, %v408, %v402
      %vm411 = vcmask 195584
      %v412 = vsel %vm411, %v410, %v406
      %v413 = vpack.c.bf16 %v412, %v412
      %vm414 = vcmask 257024
      %415 = vst.msk [vmem:[%s152] sm:$0xf] %vm414, %v413
      %p416 = scmp.lt.s32.totalorder %s13, 1
      %s417 = scalar_select %p416, %s13, 1
      %s418 = smul.addr %s417, 4
      %s419 = scalar_lea.vmem %s2, %s418
      // Predicated region
      $region29: #{bert_qa_forward.13} parent=27 // pred_check
        %p420 = pneg %p83
      $region30: #{bert_qa_forward.13} parent=27 // pred_check_branch
        %422 = sbr.rel (%p420) target = $region32
      $region31: #{bert_qa_forward.13} parent=27 // pred_region
        _
      $region32: #{bert_qa_forward.13} parent=27 // pred_fallthru
        _
    $region28: #{bert_qa_forward.13} parent=5 // pred_fallthru
      _
    %p423 = scmp.le.s32.totalorder 2, %s8
    // Predicated region
    $region33: #{bert_qa_forward.13} parent=5 // pred_check
      %p424 = pneg %p423
    $region34: #{bert_qa_forward.13} parent=5 // pred_check_branch
      %426 = sbr.rel (%p424) target = $region36
    $region35: #{bert_qa_forward.13} parent=5 // pred_region
      %s427 = ssub.s32 %s8, 2
      // Predicated region
      $region37: #{bert_qa_forward.13} parent=35 // pred_check
        %p428 = pneg %p89
      $region38: #{bert_qa_forward.13} parent=35 // pred_check_branch
        %430 = sbr.rel (%p428) target = $region40
      $region39: #{bert_qa_forward.13} parent=35 // pred_region
        %p431 = scmp.lt.s32.totalorder %s14, 1
        %s432 = scalar_select %p431, %s14, 1
        %s433 = smul.addr %s432, 4
        %s434 = scalar_lea.vmem %s2, %s433
      $region40: #{bert_qa_forward.13} parent=35 // pred_fallthru
        _
    $region36: #{bert_qa_forward.13} parent=5 // pred_fallthru
      _
  $region6: #{bert_qa_forward.13} parent=0 // loop_footer
    %s12 = sadd.s32 1, %s8
  $region7: #{bert_qa_forward.13} parent=0 // loop_footer_branch
    %7 = sbr.rel target = $region3
  $region8: #{bert_qa_forward.13} parent=0 // loop_exit
    _

// kernel: bert_qa_forward.15
$region0: #{bert_qa_forward.15}
  #allocation0 [shape = 'u32[]', space=smem, size = 0x4, offset = 0x4, fixed_abs, tag = 'smem constant byte address 0x4 - core index']
  #allocation1 [shape = 'u32[72,128]{1,0:T(1,128)}', space=vmem, size = 0x9000, scoped, tag = 'internal scratch']
  %s0 = inlined_call_operand.vmem [shape: bf16[16,32], index: 0, kind: input, shape index: {}]
  %s1 = inlined_call_operand.vmem [shape: bf16[32,64], index: 1, kind: input, shape index: {}]
  %s2 = inlined_call_operand.vmem [shape: f32[1,64], index: 2, kind: input, shape index: {}]
  %s3 = inlined_call_operand.vmem [shape: bf16[16,64], index: 3, kind: output, shape index: {}]
  %s4 = sld [smem:[#allocation0]]
  $region22: #{bert_qa_forward.15} parent=0
    _
  %s6 = ssub.s32 1, %s4
  %s7 = scalar_select 0, %s6, %s4
  // Predicated region
  $region2: #{bert_qa_forward.15} parent=0 // pred_check
    _
  $region3: #{bert_qa_forward.15} parent=0 // pred_check_branch
    %9 = sbr.rel (0) target = $region5
  $region4: #{bert_qa_forward.15} parent=0 // pred_region
    _
  $region5: #{bert_qa_forward.15} parent=0 // pred_fallthru
    _
  // Predicated region
  $region6: #{bert_qa_forward.15} parent=0 // pred_check
    _
  $region7: #{bert_qa_forward.15} parent=0 // pred_check_branch
    %11 = sbr.rel (0) target = $region9
  $region8: #{bert_qa_forward.15} parent=0 // pred_region
    _
  $region9: #{bert_qa_forward.15} parent=0 // pred_fallthru
    _
  // Predicated region
  $region10: #{bert_qa_forward.15} parent=0 // pred_check
    _
  $region11: #{bert_qa_forward.15} parent=0 // pred_check_branch
    %13 = sbr.rel (0) target = $region13
  $region12: #{bert_qa_forward.15} parent=0 // pred_region
    _
  $region13: #{bert_qa_forward.15} parent=0 // pred_fallthru
    _
  %v15 = vld [vmem:[%s0] sm:$0xf]
  %v16 = vld [vmem:[%s0 + $0x4] sm:$0xf]
  %v17 = vld [vmem:[%s1] sm:$0xf]
  %v18 = vld [vmem:[%s1 + $0x4] sm:$0xf]
  %v19 = vld [vmem:[%s1 + $0x8] sm:$0xf]
  %v20 = vld [vmem:[%s1 + $0xc] sm:$0xf]
  %v21 = vld [vmem:[%s2] sm:$0x1]
  %v23 = vperm.slane %v21, 0
  %v27 = vunpack.c.l.b16 %v15
  %v28 = vunpack.c.l.b16 %v16
  %v29 = vpack.c.b16 %v28, %v27
  %v34 = vunpack.c.l.b16 %v17
  %v35 = vunpack.c.l.b16 %v18
  %v36 = vunpack.c.l.b16 %v19
  %v37 = vunpack.c.l.b16 %v20
  %v38 = vpack.c.b16 %v35, %v34
  %v39 = vpack.c.b16 %v37, %v36
  %vm42 = vcmask 261120
  %v44 = vsel %vm42, %v29, 0
  %46 = vmatpush.bf16.msra.mxu0 0
  %47 = vmatpush.bf16.msra.mxu0 0
  %48 = vmatpush.bf16.msra.mxu0 0
  %49 = vmatpush.bf16.msra.mxu0 0
  %50 = vmatpush.bf16.msra.mxu0 0
  %51 = vmatpush.bf16.msra.mxu0 0
  %52 = vmatpush.bf16.msra.mxu0 %v39
  %53 = vmatpush.bf16.msra.mxu0 %v38
  %54 = vmatmul.bf16.gmra.mxu0 %v44
  %v55 = vpop.f32.mrf.mxu0
  %v56 = vadd.f32 %v23, %v55
  %v57 = vpop.f32.mrf.mxu0
  %v58 = vadd.f32 %v23, %v57
  %59 = vdwg.mxu0
  %v60 = vmul.f32 %v56, 0.5
  %v61 = vmul.f32 %v58, 0.5
  %v62 = vmul.f32 %v56, 0.044715
  %v63 = vmul.f32 %v58, 0.044715
  %v64 = vmul.f32 %v62, %v56
  %v65 = vmul.f32 %v63, %v58
  %v66 = vmul.f32 %v64, %v56
  %v67 = vmul.f32 %v65, %v58
  %v68 = vadd.f32 %v56, %v66
  %v69 = vadd.f32 %v58, %v67
  %v70 = vmul.f32 %v68, 0.7978846
  %v71 = vmul.f32 %v69, 0.7978846
  %v72 = vtanh.pop %v70
  %v73 = vtanh.pop %v71
  %v74 = vadd.f32 %v72, 1.0
  %v75 = vadd.f32 %v73, 1.0
  %v76 = vmul.f32 %v60, %v74
  %v77 = vmul.f32 %v61, %v75
  %v78 = vpack.c.bf16 %v76, %v76
  %v79 = vpack.c.bf16 %v77, %v77
  %vm80 = vcmask 519168
  %81 = vst.msk [vmem:[%s3] sm:$0xf] %vm80, %v78
  %82 = vst.msk [vmem:[%s3 + $0x4] sm:$0xf] %vm80, %v79
  // Predicated region
  $region14: #{bert_qa_forward.15} parent=0 // pred_check
    _
  $region15: #{bert_qa_forward.15} parent=0 // pred_check_branch
    %84 = sbr.rel (0) target = $region17
  $region16: #{bert_qa_forward.15} parent=0 // pred_region
    _
  $region17: #{bert_qa_forward.15} parent=0 // pred_fallthru
    _
  // Predicated region
  $region18: #{bert_qa_forward.15} parent=0 // pred_check
    _
  $region19: #{bert_qa_forward.15} parent=0 // pred_check_branch
    %86 = sbr.rel (0) target = $region21
  $region20: #{bert_qa_forward.15} parent=0 // pred_region
    _
  $region21: #{bert_qa_forward.15} parent=0 // pred_fallthru
    _

// kernel: bert_qa_forward.16
$region0: #{bert_qa_forward.16}
  #allocation0 [shape = 'u32[]', space=smem, size = 0x4, offset = 0x4, fixed_abs, tag = 'smem constant byte address 0x4 - core index']
  #allocation1 [shape = 'u32[72,128]{1,0:T(1,128)}', space=vmem, size = 0x9000, scoped, tag = 'internal scratch']
  %s0 = inlined_call_operand.vmem [shape: bf16[16,64], index: 0, kind: input, shape index: {}]
  %s1 = inlined_call_operand.vmem [shape: bf16[64,32], index: 1, kind: input, shape index: {}]
  %s2 = inlined_call_operand.vmem [shape: f32[1,32], index: 2, kind: input, shape index: {}]
  %s3 = inlined_call_operand.vmem [shape: bf16[16,32], index: 3, kind: input, shape index: {}]
  %s4 = inlined_call_operand.vmem [shape: f32[1,32], index: 4, kind: input, shape index: {}]
  %s5 = inlined_call_operand.vmem [shape: f32[1,32], index: 5, kind: input, shape index: {}]
  %s6 = inlined_call_operand.vmem [shape: bf16[16,32], index: 6, kind: output, shape index: {}]
  %s7 = sld [smem:[#allocation0]]
  $region34: #{bert_qa_forward.16} parent=0
    _
  %s9 = ssub.s32 1, %s7
  %s10 = scalar_select 0, %s9, %s7
  // Predicated region
  $region2: #{bert_qa_forward.16} parent=0 // pred_check
    _
  $region3: #{bert_qa_forward.16} parent=0 // pred_check_branch
    %12 = sbr.rel (0) target = $region5
  $region4: #{bert_qa_forward.16} parent=0 // pred_region
    _
  $region5: #{bert_qa_forward.16} parent=0 // pred_fallthru
    _
  // Predicated region
  $region6: #{bert_qa_forward.16} parent=0 // pred_check
    _
  $region7: #{bert_qa_forward.16} parent=0 // pred_check_branch
    %14 = sbr.rel (0) target = $region9
  $region8: #{bert_qa_forward.16} parent=0 // pred_region
    _
  $region9: #{bert_qa_forward.16} parent=0 // pred_fallthru
    _
  // Predicated region
  $region10: #{bert_qa_forward.16} parent=0 // pred_check
    _
  $region11: #{bert_qa_forward.16} parent=0 // pred_check_branch
    %16 = sbr.rel (0) target = $region13
  $region12: #{bert_qa_forward.16} parent=0 // pred_region
    _
  $region13: #{bert_qa_forward.16} parent=0 // pred_fallthru
    _
  // Predicated region
  $region14: #{bert_qa_forward.16} parent=0 // pred_check
    _
  $region15: #{bert_qa_forward.16} parent=0 // pred_check_branch
    %18 = sbr.rel (0) target = $region17
  $region16: #{bert_qa_forward.16} parent=0 // pred_region
    _
  $region17: #{bert_qa_forward.16} parent=0 // pred_fallthru
    _
  // Predicated region
  $region18: #{bert_qa_forward.16} parent=0 // pred_check
    _
  $region19: #{bert_qa_forward.16} parent=0 // pred_check_branch
    %20 = sbr.rel (0) target = $region21
  $region20: #{bert_qa_forward.16} parent=0 // pred_region
    _
  $region21: #{bert_qa_forward.16} parent=0 // pred_fallthru
    _
  // Predicated region
  $region22: #{bert_qa_forward.16} parent=0 // pred_check
    _
  $region23: #{bert_qa_forward.16} parent=0 // pred_check_branch
    %22 = sbr.rel (0) target = $region25
  $region24: #{bert_qa_forward.16} parent=0 // pred_region
    _
  $region25: #{bert_qa_forward.16} parent=0 // pred_fallthru
    _
  %v24 = vld [vmem:[%s0] sm:$0xf]
  %v25 = vld [vmem:[%s0 + $0x4] sm:$0xf]
  %v26 = vld [vmem:[%s1] sm:$0xf]
  %v27 = vld [vmem:[%s1 + $0x4] sm:$0xf]
  %v28 = vld [vmem:[%s1 + $0x8] sm:$0xf]
  %v29 = vld [vmem:[%s1 + $0xc] sm:$0xf]
  %v30 = vld [vmem:[%s1 + $0x10] sm:$0xf]
  %v31 = vld [vmem:[%s1 + $0x14] sm:$0xf]
  %v32 = vld [vmem:[%s1 + $0x18] sm:$0xf]
  %v33 = vld [vmem:[%s1 + $0x1c] sm:$0xf]
  %v34 = vld [vmem:[%s2] sm:$0x1]
  %v36 = vperm.slane %v34, 0
  %v40 = vunpack.c.l.b16 %v24
  %v41 = vunpack.c.l.b16 %v25
  %v42 = vpack.c.b16 %v41, %v40
  %v51 = vunpack.c.l.b16 %v26
  %v52 = vunpack.c.l.b16 %v27
  %v53 = vunpack.c.l.b16 %v28
  %v54 = vunpack.c.l.b16 %v29
  %v55 = vunpack.c.l.b16 %v30
  %v56 = vunpack.c.l.b16 %v31
  %v57 = vunpack.c.l.b16 %v32
  %v58 = vunpack.c.l.b16 %v33
  %v59 = vpack.c.b16 %v52, %v51
  %v60 = vpack.c.b16 %v54, %v53
  %v61 = vpack.c.b16 %v56, %v55
  %v62 = vpack.c.b16 %v58, %v57
  %vm67 = vcmask 523264
  %v69 = vsel %vm67, %v42, 0
  %71 = vmatpush.bf16.msra.mxu0 0
  %72 = vmatpush.bf16.msra.mxu0 0
  %73 = vmatpush.bf16.msra.mxu0 0
  %74 = vmatpush.bf16.msra.mxu0 0
  %75 = vmatpush.bf16.msra.mxu0 %v62
  %76 = vmatpush.bf16.msra.mxu0 %v61
  %77 = vmatpush.bf16.msra.mxu0 %v60
  %78 = vmatpush.bf16.msra.mxu0 %v59
  %79 = vmatmul.bf16.gmra.mxu0 %v69
  %v80 = vpop.f32.mrf.mxu0
  %v81 = vadd.f32 %v36, %v80
  %v82 = vpop.f32.mrf.mxu0
  %v83 = vadd.f32 %v36, %v82
  %84 = vdwg.mxu0
  %v85 = vld [vmem:[%s3] sm:$0xf]
  %v86 = vld [vmem:[%s3 + $0x4] sm:$0xf]
  %v87 = vunpack.c.l.bf16 %v85
  %v88 = vunpack.c.l.bf16 %v86
  %v89 = vadd.f32 %v81, %v87
  %v90 = vadd.f32 %v83, %v88
  %vm91 = vcmask 261120
  %v92 = vsel %vm91, %v89, 0.0
  %93 = vadd.xlane.f32.xlu0 %v92
  %v94 = vpop.xlane.xlu0 %93
  %v95 = vsel %vm91, %v90, 0.0
  %96 = vadd.xlane.f32.xlu0 %v95
  %v97 = vpop.xlane.xlu0 %96
  %v98 = vrcp.pop 32.0
  %v99 = vmul.f32 32.0, %v98
  %v100 = vsub.f32 1.0, %v99
  %v101 = vmul.f32 %v98, %v100
  %v102 = vadd.f32 %v98, %v101
  %vm103 = vweird.f32 %v98
  %v104 = vsel %vm103, %v98, %v102
  %v105 = vmul.f32 %v94, %v104
  %v106 = vmul.f32 %v97, %v104
  %v107 = vsub.f32 %v89, %v105
  %v108 = vsub.f32 %v90, %v106
  %v109 = vmul.f32 %v107, %v107
  %v110 = vmul.f32 %v108, %v108
  %v111 = vsel %vm91, %v109, 0.0
  %112 = vadd.xlane.f32.xlu0 %v111
  %v113 = vpop.xlane.xlu0 %112
  %v114 = vsel %vm91, %v110, 0.0
  %115 = vadd.xlane.f32.xlu0 %v114
  %v116 = vpop.xlane.xlu0 %115
  %v117 = vmul.f32 %v113, %v104
  %v118 = vmul.f32 %v116, %v104
  %v119 = vadd.f32 %v117, 1e-12
  %v120 = vadd.f32 %v118, 1e-12
  %v121 = vrsqrt.pop %v119
  %v122 = vmul.f32 %v121, %v119
  %v123 = vmul.f32 %v122, %v121
  %v124 = vmul.f32 0.5, %v123
  %v125 = vsub.f32 1.5, %v124
  %v126 = vmul.f32 %v121, %v125
  %vm127 = vweird.f32 %v119
  %vm128 = vweird.f32 %v121
  %vm129 = vmor %vm127, %vm128
  %v130 = vsel %vm129, %v121, %v126
  %v131 = vrsqrt.pop %v120
  %v132 = vmul.f32 %v131, %v120
  %v133 = vmul.f32 %v132, %v131
  %v134 = vmul.f32 0.5, %v133
  %v135 = vsub.f32 1.5, %v134
  %v136 = vmul.f32 %v131, %v135
  %vm137 = vweird.f32 %v120
  %vm138 = vweird.f32 %v131
  %vm139 = vmor %vm137, %vm138
  %v140 = vsel %vm139, %v131, %v136
  %v141 = vmul.f32 %v107, %v130
  %v142 = vmul.f32 %v108, %v140
  %v143 = vld [vmem:[%s4] sm:$0x1]
  %v145 = vperm.slane %v143, 0
  %v147 = vmul.f32 %v141, %v145
  %v148 = vmul.f32 %v142, %v145
  %v149 = vld [vmem:[%s5] sm:$0x1]
  %v151 = vperm.slane %v149, 0
  %v153 = vadd.f32 %v147, %v151
  %v154 = vadd.f32 %v148, %v151
  %v155 = vpack.c.bf16 %v153, %v153
  %v156 = vpack.c.bf16 %v154, %v154
  %vm157 = vcmask 257024
  %158 = vst.msk [vmem:[%s6] sm:$0xf] %vm157, %v155
  %159 = vst.msk [vmem:[%s6 + $0x4] sm:$0xf] %vm157, %v156
  // Predicated region
  $region26: #{bert_qa_forward.16} parent=0 // pred_check
    _
  $region27: #{bert_qa_forward.16} parent=0 // pred_check_branch
    %161 = sbr.rel (0) target = $region29
  $region28: #{bert_qa_forward.16} parent=0 // pred_region
    _
  $region29: #{bert_qa_forward.16} parent=0 // pred_fallthru
    _
  // Predicated region
  $region30: #{bert_qa_forward.16} parent=0 // pred_check
    _
  $region31: #{bert_qa_forward.16} parent=0 // pred_check_branch
    %163 = sbr.rel (0) target = $region33
  $region32: #{bert_qa_forward.16} parent=0 // pred_region
    _
  $region33: #{bert_qa_forward.16} parent=0 // pred_fallthru
    _

</llo_original>
